<compile_context>
chip_gen: v7x
topology: tpu7x:2x2x1
jax: 0.10.0
libtpu: 0.0.40
codegen_flags: <defaults>
</compile_context>

<pallas_src>
import jax
import jax.numpy as jnp
from jax.experimental import pallas as pl
from jax.experimental.pallas import tpu as pltpu


NUM_KEYPOINTS = 16


def _heads_kernel(x_ref, coef_ref, wm_ref, bm_ref, wh_ref, bh_ref,
                  mask_ref, pose_ref, m_sc, acc_sc):
    """One grid step == (batch element, frame block, spatial chunk).

    x_ref    : (1, C, F, HWc)  input pixels (native dtype), spatial on lanes
    coef_ref : (3, HWc)        rows = [ones, x-coord, y-coord] for this chunk
    wm_ref   : (C, 1)          mask 1x1-conv weights
    bm_ref   : (1, 1)          mask bias
    wh_ref   : (K, C)          heatmap 1x1-conv weights (transposed)
    bh_ref   : (K, 1)          heatmap bias
    mask_ref : (1, F, HWc)     sigmoid mask chunk (lane dense)
    pose_ref : (1, F, 3*K)     packed [ex(K), ey(K), score(K)] per frame
    m_sc     : (F, K)   f32    running spatial max   (online softmax)
    acc_sc   : (F, K, 3) f32   running [sum e, sum e*x, sum e*y]
    """
    hj = pl.program_id(2)
    nh = pl.num_programs(2)
    k = wh_ref.shape[0]
    c = wh_ref.shape[1]

    # ---- fused heads: single pass over channels (biases folded into ci==0) --
    bh = bh_ref[...][None]                            # (1, K, 1)
    m_logit = None
    heat = None
    for ci in range(c):
        xc = x_ref[0, ci].astype(jnp.float32)         # (F, HWc) — no full copy
        whc = wh_ref[:, ci:ci + 1][None]              # (1, K, 1)
        if ci == 0:
            m_logit = xc * wm_ref[ci] + bm_ref[0]     # (F, HWc)
            heat = xc[:, None, :] * whc + bh          # (F, K, HWc)
        else:
            m_logit = m_logit + xc * wm_ref[ci]
            heat = heat + xc[:, None, :] * whc

    # ---- mask head: pointwise sigmoid, written per spatial chunk ------------
    mask_ref[0] = jax.nn.sigmoid(m_logit).astype(mask_ref.dtype)

    # ---- pose head: online softmax over spatial chunks ----------------------
    @pl.when(hj == 0)
    def _():
        m_sc[...] = jnp.full_like(m_sc, -jnp.inf)
        acc_sc[...] = jnp.zeros_like(acc_sc)

    f, _, hwc = heat.shape
    chunk_max = jnp.max(heat, axis=-1)                # (F, K)
    m_new = jnp.maximum(m_sc[...], chunk_max)         # (F, K)
    alpha = jnp.exp(m_sc[...] - m_new)                # rescale old accumulators
    # TODO(synk): on v6e/v7x, (heat - m_new) could be cast to bf16 before exp
    # for ~2x EUP throughput; kept f32 for cross-generation exactness (v5e has
    # no bf16 VPU/EUP).
    e = jnp.exp(heat - m_new[..., None])              # (F, K, HWc)

    # One MXU contraction replaces the sum(e), sum(e*x), sum(e*y) VPU passes:
    #   (F*K, HWc) . [ones; x; y]^T  -> (F*K, 3)
    red = jax.lax.dot_general(
        e.reshape(f * k, hwc), coef_ref[...],
        dimension_numbers=(((1,), (1,)), ((), ())),
        preferred_element_type=jnp.float32)           # (F*K, 3)

    acc_sc[...] = acc_sc[...] * alpha[..., None] + red.reshape(f, k, 3)
    m_sc[...] = m_new

    @pl.when(hj == nh - 1)
    def _():
        acc = acc_sc[...]                             # (F, K, 3)
        r = pl.reciprocal(acc[..., 0], approx=True)   # EUP, (F, K)
        ex = acc[..., 1] * r                          # expected x
        ey = acc[..., 2] * r                          # expected y
        score = r                                     # peak prob == 1/sum(e)
        # single packed store: [ex(K) | ey(K) | score(K)] per frame
        pose_ref[0] = jnp.concatenate([ex, ey, score], axis=-1)   # (F, 3K)


# --------------------------------------------------------------------------- #
# Tiling / VMEM budgeting
# --------------------------------------------------------------------------- #
def _sublane_multiple(dtype) -> int:
    """Second-minor tiling multiple for a block of this dtype."""
    return {4: 8, 2: 16, 1: 32}.get(jnp.dtype(dtype).itemsize, 8)


def _vmem_block_bytes(f, hwc, k, c, in_itemsize, mask_itemsize):
    """Conservative peak VMEM for one grid step (all live buffers)."""
    fp = max(f, 8)
    heat_plus_e = 2 * f * k * hwc * 4            # heat and e intermediates, f32
    x_in = 2 * c * fp * hwc * in_itemsize        # double-buffered input block
    mask_out = 2 * fp * hwc * mask_itemsize      # double-buffered mask block
    coef = 2 * 8 * hwc * 4                       # (3, HWc) pads to 8 sublanes
    small = 2 * fp * k * 128 * 4 + (2 << 20)     # acc/red/pose padding + slack
    return heat_plus_e + x_in + mask_out + coef + small


def _pick_tiles(t, hw, k, c, in_dtype, mask_dtype, budget_bytes):
    """Pick (frames_per_block, hw_chunk) maximizing the tile within budget."""
    sub = max(8, _sublane_multiple(in_dtype), _sublane_multiple(mask_dtype))
    in_sz = jnp.dtype(in_dtype).itemsize
    mk_sz = jnp.dtype(mask_dtype).itemsize
    f_cands = [f for f in range(1, t + 1)
               if t % f == 0 and (f == t or f % sub == 0)]
    hw_cands = sorted({hw} | {s for s in range(128, hw + 1, 128) if hw % s == 0})
    best = None                                   # (score, f, hwc)
    for f in f_cands:
        for hwc in hw_cands:
            if _vmem_block_bytes(f, hwc, k, c, in_sz, mk_sz) > budget_bytes:
                continue
            score = (f * hwc, hwc)                # big tiles, then fewer chunks
            if best is None or score > best[0]:
                best = (score, f, hwc)
    if best is None:
        # nothing fits the budget: smallest legal tile (best effort)
        return min(f_cands), min(hw_cands)
    return best[1], best[2]


def _vmem_budget_and_limit():
    """Generation-aware working-set budget and explicit scoped-VMEM limit."""
    phys = 64 << 20                               # conservative default (v7x)
    try:
        info = pltpu.get_tpu_info()
        phys = int(getattr(info, "vmem_capacity_bytes", phys))
    except Exception:
        pass
    budget = min(int(phys * 0.6), 48 << 20)       # ≤ ~48 MiB, ≤ 60% of physical
    limit = int(min(phys, budget + (16 << 20)))   # headroom; also lifts v5e's
    return budget, limit                          # 16 MiB scoped default


# --------------------------------------------------------------------------- #
# pallas_call wrapper
# --------------------------------------------------------------------------- #
def _run_pallas_heads(x, coefs, wm, bm, wh_t, bh, *, frames_per_block,
                      hw_chunk, mask_dtype, vmem_limit_bytes):
    """x: (B, C, T, HW) native dtype -> (mask (B,T,HW), pose (B,T,3K) f32)."""
    b, c, t, hw = x.shape
    k = wh_t.shape[0]
    f = frames_per_block
    nt = t // f
    nh = hw // hw_chunk

    grid_spec = pltpu.PrefetchScalarGridSpec(
        num_scalar_prefetch=0,
        grid=(b, nt, nh),                                   # HW chunk innermost
        in_specs=[
            pl.BlockSpec((1, c, f, hw_chunk),
                         lambda bi, ti, hj: (bi, 0, ti, hj)),   # pixels
            pl.BlockSpec((3, hw_chunk), lambda bi, ti, hj: (0, hj)),  # [1;x;y]
            pl.BlockSpec((c, 1), lambda bi, ti, hj: (0, 0)),    # mask W
            pl.BlockSpec((1, 1), lambda bi, ti, hj: (0, 0)),    # mask b
            pl.BlockSpec((k, c), lambda bi, ti, hj: (0, 0)),    # heat W^T
            pl.BlockSpec((k, 1), lambda bi, ti, hj: (0, 0)),    # heat b
        ],
        out_specs=[
            pl.BlockSpec((1, f, hw_chunk),
                         lambda bi, ti, hj: (bi, ti, hj)),      # mask
            pl.BlockSpec((1, f, 3 * k),
                         lambda bi, ti, hj: (bi, ti, 0)),       # pose (resident)
        ],
        scratch_shapes=[
            pltpu.VMEM((f, k), jnp.float32),       # running max
            pltpu.VMEM((f, k, 3), jnp.float32),    # [sum e, sum e*x, sum e*y]
        ],
    )

    out_shapes = (
        jax.ShapeDtypeStruct((b, t, hw), mask_dtype),
        jax.ShapeDtypeStruct((b, t, 3 * k), jnp.float32),
    )

    return pl.pallas_call(
        _heads_kernel,
        out_shape=out_shapes,
        grid_spec=grid_spec,
        compiler_params=pltpu.CompilerParams(
            dimension_semantics=("parallel", "parallel", "arbitrary"),
            vmem_limit_bytes=vmem_limit_bytes),
    )(x, coefs, wm, bm, wh_t, bh)


# --------------------------------------------------------------------------- #
# Module wrapper
# --------------------------------------------------------------------------- #
class PreprocessPallas:
    """JAX/Pallas stand-in for the PyTorch `Preprocess` module."""

    NUM_KEYPOINTS = NUM_KEYPOINTS

    def __init__(self, in_channels: int):
        self.in_channels = in_channels
        k = self.NUM_KEYPOINTS
        # Deterministic synthetic parameters (1x1-conv mask head + K-keypoint
        # heatmap head; the real YOLO weights are not defined in the source).
        key = jax.random.PRNGKey(42)
        km, kh = jax.random.split(key)
        self.w_mask = jax.random.normal(km, (in_channels, 1), jnp.float32) * 0.5
        self.b_mask = jnp.zeros((1, 1), jnp.float32)
        w_heat = jax.random.normal(kh, (in_channels, k), jnp.float32) * 0.5
        self.w_heat_t = jnp.transpose(w_heat)            # (K, C)
        self.b_heat_t = jnp.zeros((k, 1), jnp.float32)   # (K, 1)

    def shape_check(self, check: list):
        b, c, t, h, w = check[0].shape
        for ck in check[0:]:
            if len(ck.shape) == 1:
                assert ck.shape[0] == b
            else:
                assert ck.shape[2] == t

    # TODO(synk): `save_img` writes PNGs to disk (torchvision.io.write_png);
    # pure file I/O, no Pallas/TPU equivalent — intentionally omitted.

    def forward(self, batch, labels, batch_idx: int):
        b, c, t, h, w = batch.shape
        assert c == self.in_channels
        hw = h * w
        k = self.NUM_KEYPOINTS

        # Lane-dense view: pure reshape (no transpose, no dtype cast).
        x = batch.reshape(b, c, t, hw)

        # Mask writeback dtype: keep the input float dtype (bf16 frames ->
        # bf16 mask, halving HBM writeback); bf16 for integer/uint8 frames.
        mask_dtype = batch.dtype if jnp.issubdtype(batch.dtype, jnp.floating) \
            else jnp.bfloat16

        # Stacked reduction coefficients [ones; x; y]: one (3, HW) f32 array
        # that is simultaneously the coordinate grid and the MXU RHS.
        idx = jnp.arange(hw, dtype=jnp.float32)
        coefs = jnp.stack(
            [jnp.ones_like(idx),
             jnp.mod(idx, float(w)),
             jnp.floor(idx / float(w))], axis=0)          # (3, HW)

        budget, vmem_limit = _vmem_budget_and_limit()
        fpb, hw_chunk = _pick_tiles(t, hw, k, c, batch.dtype, mask_dtype, budget)

        mask_f, pose_f = _run_pallas_heads(
            x, coefs, self.w_mask, self.b_mask, self.w_heat_t, self.b_heat_t,
            frames_per_block=fpb, hw_chunk=hw_chunk,
            mask_dtype=mask_dtype, vmem_limit_bytes=vmem_limit)

        video = batch                                    # true pass-through
        mask = mask_f.reshape(b, t, h, w)[:, None]       # (b,1,t,h,w), free view
        # packed pose (b, t, 3K) -> (b, t, 3, K) -> (b, K, t, 3); tiny tensor.
        pose = jnp.transpose(pose_f.reshape(b, t, 3, k), (0, 3, 1, 2))

        self.shape_check([video, labels, mask, pose])
        return (video, labels, None, mask, pose)

    __call__ = forward


if __name__ == "__main__":
    B, C, T, H, W = 2, 3, 8, 16, 16
    key = jax.random.PRNGKey(0)
    kb, kl = jax.random.split(key)
    batch = jax.random.uniform(kb, (B, C, T, H, W), jnp.float32)
    labels = jax.random.randint(kl, (B,), 0, 5, jnp.int32)

    model = PreprocessPallas(in_channels=C)
    video, labels_out, none_slot, mask, pose = model(batch, labels, batch_idx=0)

    jax.block_until_ready((video, mask, pose))

    # Shape contract of the original module.
    assert video.shape == (B, C, T, H, W)
    assert mask.shape == (B, 1, T, H, W)
    assert pose.shape == (B, PreprocessPallas.NUM_KEYPOINTS, T, 3)
    assert none_slot is None

    # Robust sanity invariants (tolerant of the approx EUP reciprocal).
    assert bool(jnp.all(video == batch))                          # pass-through
    mask_f32 = mask.astype(jnp.float32)
    assert bool(jnp.all((mask_f32 > 0.0) & (mask_f32 < 1.0)))     # sigmoid range
    assert bool(jnp.all((pose[..., 0] >= -0.1) & (pose[..., 0] <= W - 1 + 0.1)))
    assert bool(jnp.all((pose[..., 1] >= -0.1) & (pose[..., 1] <= H - 1 + 0.1)))
    assert bool(jnp.all((pose[..., 2] > 0.0) & (pose[..., 2] <= 1.01)))

    print("KERNEL_OK")
</pallas_src>

<mosaic_0001>
module attributes {stable_mosaic.version = 11 : i64} {
  func.func @_heads_kernel(%arg0: i32, %arg1: i32, %arg2: i32, %arg3: memref<1x3x8x256xf32, #tpu.memory_space<vmem>>, %arg4: memref<3x256xf32, #tpu.memory_space<vmem>>, %arg5: memref<3x1xf32, #tpu.memory_space<vmem>>, %arg6: memref<1x1xf32, #tpu.memory_space<vmem>>, %arg7: memref<16x3xf32, #tpu.memory_space<vmem>>, %arg8: memref<16x1xf32, #tpu.memory_space<vmem>>, %arg9: memref<1x8x256xf32, #tpu.memory_space<vmem>>, %arg10: memref<1x8x48xf32, #tpu.memory_space<vmem>>, %arg11: memref<8x16xf32, #tpu.memory_space<vmem>>, %arg12: memref<8x16x3xf32, #tpu.memory_space<vmem>>) attributes {dimension_semantics = [#tpu.dimension_semantics<parallel>, #tpu.dimension_semantics<parallel>, #tpu.dimension_semantics<arbitrary>], iteration_bounds = array<i64: 2, 1, 1>, scalar_prefetch = 0 : i64, scratch_operands = 2 : i64, tpu.core_type = #tpu.core_type<tc>, window_params = [{transform_indices = @transform_0, window_bounds = array<i64: 1, 3, 8, 256>}, {transform_indices = @transform_1, window_bounds = array<i64: 3, 256>}, {pipeline_mode = #tpu.pipeline_mode<synchronous>, transform_indices = @transform_2, window_bounds = array<i64: 3, 1>}, {pipeline_mode = #tpu.pipeline_mode<synchronous>, transform_indices = @transform_3, window_bounds = array<i64: 1, 1>}, {pipeline_mode = #tpu.pipeline_mode<synchronous>, transform_indices = @transform_4, window_bounds = array<i64: 16, 3>}, {pipeline_mode = #tpu.pipeline_mode<synchronous>, transform_indices = @transform_5, window_bounds = array<i64: 16, 1>}, {transform_indices = @transform_6, window_bounds = array<i64: 1, 8, 256>}, {transform_indices = @transform_7, window_bounds = array<i64: 1, 8, 48>}]} {
    %c0 = arith.constant 0 : index
    %c0_0 = arith.constant 0 : index
    %0 = vector.load %arg8[%c0, %c0_0] : memref<16x1xf32, #tpu.memory_space<vmem>>, vector<16x1xf32>
    %1 = vector.shape_cast %0 : vector<16x1xf32> to vector<1x16x1xf32>
    %c0_1 = arith.constant 0 : index
    %c0_2 = arith.constant 0 : index
    %c0_3 = arith.constant 0 : index
    %c0_4 = arith.constant 0 : index
    %2 = vector.load %arg3[%c0_1, %c0_2, %c0_3, %c0_4] : memref<1x3x8x256xf32, #tpu.memory_space<vmem>>, vector<1x1x8x256xf32>
    %3 = vector.shape_cast %2 : vector<1x1x8x256xf32> to vector<8x256xf32>
    %c0_5 = arith.constant 0 : index
    %c0_6 = arith.constant 0 : index
    %4 = vector.load %arg7[%c0_5, %c0_6] : memref<16x3xf32, #tpu.memory_space<vmem>>, vector<16x1xf32>
    %5 = vector.shape_cast %4 : vector<16x1xf32> to vector<1x16x1xf32>
    %c0_7 = arith.constant 0 : index
    %c0_8 = arith.constant 0 : index
    %6 = vector.load %arg5[%c0_7, %c0_8] : memref<3x1xf32, #tpu.memory_space<vmem>>, vector<1x1xf32>
    %7 = vector.shape_cast %6 : vector<1x1xf32> to vector<1xf32>
    %8 = vector.shape_cast %7 : vector<1xf32> to vector<1x1xf32>
    %9 = vector.broadcast %8 : vector<1x1xf32> to vector<8x256xf32>
    %10 = arith.mulf %3, %9 : vector<8x256xf32>
    %c0_9 = arith.constant 0 : index
    %c0_10 = arith.constant 0 : index
    %11 = vector.load %arg6[%c0_9, %c0_10] : memref<1x1xf32, #tpu.memory_space<vmem>>, vector<1x1xf32>
    %12 = vector.shape_cast %11 : vector<1x1xf32> to vector<1xf32>
    %13 = vector.shape_cast %12 : vector<1xf32> to vector<1x1xf32>
    %14 = vector.broadcast %13 : vector<1x1xf32> to vector<8x256xf32>
    %15 = arith.addf %10, %14 : vector<8x256xf32>
    %16 = vector.shape_cast %3 : vector<8x256xf32> to vector<8x1x256xf32>
    %17 = vector.broadcast %16 : vector<8x1x256xf32> to vector<8x16x256xf32>
    %18 = vector.broadcast %5 : vector<1x16x1xf32> to vector<8x16x256xf32>
    %19 = arith.mulf %17, %18 : vector<8x16x256xf32>
    %20 = vector.broadcast %1 : vector<1x16x1xf32> to vector<8x16x256xf32>
    %21 = arith.addf %19, %20 : vector<8x16x256xf32>
    %c0_11 = arith.constant 0 : index
    %c1 = arith.constant 1 : index
    %c0_12 = arith.constant 0 : index
    %c0_13 = arith.constant 0 : index
    %22 = vector.load %arg3[%c0_11, %c1, %c0_12, %c0_13] : memref<1x3x8x256xf32, #tpu.memory_space<vmem>>, vector<1x1x8x256xf32>
    %23 = vector.shape_cast %22 : vector<1x1x8x256xf32> to vector<8x256xf32>
    %c0_14 = arith.constant 0 : index
    %c1_15 = arith.constant 1 : index
    %24 = vector.load %arg7[%c0_14, %c1_15] : memref<16x3xf32, #tpu.memory_space<vmem>>, vector<16x1xf32>
    %25 = vector.shape_cast %24 : vector<16x1xf32> to vector<1x16x1xf32>
    %c1_16 = arith.constant 1 : index
    %c0_17 = arith.constant 0 : index
    %26 = vector.load %arg5[%c1_16, %c0_17] : memref<3x1xf32, #tpu.memory_space<vmem>>, vector<1x1xf32>
    %27 = vector.shape_cast %26 : vector<1x1xf32> to vector<1xf32>
    %28 = vector.shape_cast %27 : vector<1xf32> to vector<1x1xf32>
    %29 = vector.broadcast %28 : vector<1x1xf32> to vector<8x256xf32>
    %30 = arith.mulf %23, %29 : vector<8x256xf32>
    %31 = arith.addf %15, %30 : vector<8x256xf32>
    %32 = vector.shape_cast %23 : vector<8x256xf32> to vector<8x1x256xf32>
    %33 = vector.broadcast %32 : vector<8x1x256xf32> to vector<8x16x256xf32>
    %34 = vector.broadcast %25 : vector<1x16x1xf32> to vector<8x16x256xf32>
    %35 = arith.mulf %33, %34 : vector<8x16x256xf32>
    %36 = arith.addf %21, %35 : vector<8x16x256xf32>
    %c0_18 = arith.constant 0 : index
    %c2 = arith.constant 2 : index
    %c0_19 = arith.constant 0 : index
    %c0_20 = arith.constant 0 : index
    %37 = vector.load %arg3[%c0_18, %c2, %c0_19, %c0_20] : memref<1x3x8x256xf32, #tpu.memory_space<vmem>>, vector<1x1x8x256xf32>
    %38 = vector.shape_cast %37 : vector<1x1x8x256xf32> to vector<8x256xf32>
    %c0_21 = arith.constant 0 : index
    %c2_22 = arith.constant 2 : index
    %39 = vector.load %arg7[%c0_21, %c2_22] : memref<16x3xf32, #tpu.memory_space<vmem>>, vector<16x1xf32>
    %40 = vector.shape_cast %39 : vector<16x1xf32> to vector<1x16x1xf32>
    %c2_23 = arith.constant 2 : index
    %c0_24 = arith.constant 0 : index
    %41 = vector.load %arg5[%c2_23, %c0_24] : memref<3x1xf32, #tpu.memory_space<vmem>>, vector<1x1xf32>
    %42 = vector.shape_cast %41 : vector<1x1xf32> to vector<1xf32>
    %43 = vector.shape_cast %42 : vector<1xf32> to vector<1x1xf32>
    %44 = vector.broadcast %43 : vector<1x1xf32> to vector<8x256xf32>
    %45 = arith.mulf %38, %44 : vector<8x256xf32>
    %46 = arith.addf %31, %45 : vector<8x256xf32>
    %47 = vector.shape_cast %38 : vector<8x256xf32> to vector<8x1x256xf32>
    %48 = vector.broadcast %47 : vector<8x1x256xf32> to vector<8x16x256xf32>
    %49 = vector.broadcast %40 : vector<1x16x1xf32> to vector<8x16x256xf32>
    %50 = arith.mulf %48, %49 : vector<8x16x256xf32>
    %51 = arith.addf %36, %50 : vector<8x16x256xf32>
    %52 = arith.negf %46 : vector<8x256xf32>
    %53 = math.exp %52 : vector<8x256xf32>
    %cst = arith.constant 1.000000e+00 : f32
    %54 = vector.broadcast %cst : f32 to vector<8x256xf32>
    %55 = arith.addf %54, %53 : vector<8x256xf32>
    %56 = arith.divf %54, %55 : vector<8x256xf32>
    %c0_25 = arith.constant 0 : index
    %c0_26 = arith.constant 0 : index
    %c0_27 = arith.constant 0 : index
    %57 = vector.load %arg9[%c0_25, %c0_26, %c0_27] : memref<1x8x256xf32, #tpu.memory_space<vmem>>, vector<1x8x256xf32>
    %58 = vector.shape_cast %57 : vector<1x8x256xf32> to vector<8x256xf32>
    %59 = vector.shape_cast %56 : vector<8x256xf32> to vector<1x8x256xf32>
    tpu.vector_store %arg9[%c0_25, %c0_26, %c0_27], %59 {strides = array<i32>} : memref<1x8x256xf32, #tpu.memory_space<vmem>>, vector<1x8x256xf32>,
    %c0_i32 = arith.constant 0 : i32
    %60 = arith.cmpi eq, %arg2, %c0_i32 : i32
    %61 = arith.extui %60 : i1 to i32
    %c0_i32_28 = arith.constant 0 : i32
    %62 = arith.cmpi ne, %61, %c0_i32_28 : i32
    scf.if %62 {
      %cst_47 = arith.constant 0xFF800000 : f32
      %87 = vector.broadcast %cst_47 : f32 to vector<8x16xf32>
      %c0_48 = arith.constant 0 : index
      %c0_49 = arith.constant 0 : index
      %88 = vector.load %arg11[%c0_48, %c0_49] : memref<8x16xf32, #tpu.memory_space<vmem>>, vector<8x16xf32>
      tpu.vector_store %arg11[%c0_48, %c0_49], %87 {strides = array<i32>} : memref<8x16xf32, #tpu.memory_space<vmem>>, vector<8x16xf32>,
      %cst_50 = arith.constant 0.000000e+00 : f32
      %89 = vector.broadcast %cst_50 : f32 to vector<8x16x3xf32>
      %c0_51 = arith.constant 0 : index
      %c0_52 = arith.constant 0 : index
      %c0_53 = arith.constant 0 : index
      %90 = vector.load %arg12[%c0_51, %c0_52, %c0_53] : memref<8x16x3xf32, #tpu.memory_space<vmem>>, vector<8x16x3xf32>
      tpu.vector_store %arg12[%c0_51, %c0_52, %c0_53], %89 {strides = array<i32>} : memref<8x16x3xf32, #tpu.memory_space<vmem>>, vector<8x16x3xf32>,
    } else {
    }
    %cst_29 = arith.constant dense<0xFF800000> : vector<8x16xf32>
    %63 = vector.multi_reduction <maximumf>, %51, %cst_29 [2] : vector<8x16x256xf32> to vector<8x16xf32>
    %c0_30 = arith.constant 0 : index
    %c0_31 = arith.constant 0 : index
    %64 = vector.load %arg11[%c0_30, %c0_31] : memref<8x16xf32, #tpu.memory_space<vmem>>, vector<8x16xf32>
    %65 = arith.maximumf %64, %63 : vector<8x16xf32>
    %c0_32 = arith.constant 0 : index
    %c0_33 = arith.constant 0 : index
    %66 = vector.load %arg11[%c0_32, %c0_33] : memref<8x16xf32, #tpu.memory_space<vmem>>, vector<8x16xf32>
    %67 = arith.subf %66, %65 : vector<8x16xf32>
    %68 = math.exp %67 : vector<8x16xf32>
    %69 = vector.shape_cast %65 : vector<8x16xf32> to vector<8x16x1xf32>
    %70 = vector.broadcast %69 : vector<8x16x1xf32> to vector<8x16x256xf32>
    %71 = arith.subf %51, %70 : vector<8x16x256xf32>
    %72 = math.exp %71 : vector<8x16x256xf32>
    %73 = vector.shape_cast %72 : vector<8x16x256xf32> to vector<128x256xf32>
    %c0_34 = arith.constant 0 : index
    %c0_35 = arith.constant 0 : index
    %74 = vector.load %arg4[%c0_34, %c0_35] : memref<3x256xf32, #tpu.memory_space<vmem>>, vector<3x256xf32>
    %cst_36 = arith.constant dense<0.000000e+00> : vector<128x3xf32>
    %75 = tpu.matmul %73, %74, %cst_36 {dimension_numbers = #tpu.dot_dimension_numbers<[1], [1], [0], [0], [0, 0, 1, 0], [], []>} : vector<128x256xf32>, vector<3x256xf32>, vector<128x3xf32> -> vector<128x3xf32>
    %c0_37 = arith.constant 0 : index
    %c0_38 = arith.constant 0 : index
    %c0_39 = arith.constant 0 : index
    %76 = vector.load %arg12[%c0_37, %c0_38, %c0_39] : memref<8x16x3xf32, #tpu.memory_space<vmem>>, vector<8x16x3xf32>
    %77 = vector.shape_cast %68 : vector<8x16xf32> to vector<8x16x1xf32>
    %78 = vector.broadcast %77 : vector<8x16x1xf32> to vector<8x16x3xf32>
    %79 = arith.mulf %76, %78 : vector<8x16x3xf32>
    %80 = vector.shape_cast %75 : vector<128x3xf32> to vector<8x16x3xf32>
    %81 = arith.addf %79, %80 : vector<8x16x3xf32>
    %c0_40 = arith.constant 0 : index
    %c0_41 = arith.constant 0 : index
    %c0_42 = arith.constant 0 : index
    %82 = vector.load %arg12[%c0_40, %c0_41, %c0_42] : memref<8x16x3xf32, #tpu.memory_space<vmem>>, vector<8x16x3xf32>
    tpu.vector_store %arg12[%c0_40, %c0_41, %c0_42], %81 {strides = array<i32>} : memref<8x16x3xf32, #tpu.memory_space<vmem>>, vector<8x16x3xf32>,
    %c0_43 = arith.constant 0 : index
    %c0_44 = arith.constant 0 : index
    %83 = vector.load %arg11[%c0_43, %c0_44] : memref<8x16xf32, #tpu.memory_space<vmem>>, vector<8x16xf32>
    tpu.vector_store %arg11[%c0_43, %c0_44], %65 {strides = array<i32>} : memref<8x16xf32, #tpu.memory_space<vmem>>, vector<8x16xf32>,
    %c0_i32_45 = arith.constant 0 : i32
    %84 = arith.cmpi eq, %arg2, %c0_i32_45 : i32
    %85 = arith.extui %84 : i1 to i32
    %c0_i32_46 = arith.constant 0 : i32
    %86 = arith.cmpi ne, %85, %c0_i32_46 : i32
    scf.if %86 {
      %c0_47 = arith.constant 0 : index
      %c0_48 = arith.constant 0 : index
      %c0_49 = arith.constant 0 : index
      %87 = vector.load %arg12[%c0_47, %c0_48, %c0_49] : memref<8x16x3xf32, #tpu.memory_space<vmem>>, vector<8x16x3xf32>
      %88 = vector.extract_strided_slice %87 {offsets = [0, 0, 0], sizes = [8, 16, 1], strides = [1, 1, 1]} : vector<8x16x3xf32> to vector<8x16x1xf32>
      %89 = vector.shape_cast %88 : vector<8x16x1xf32> to vector<8x16xf32>
      %90 = tpu.reciprocal %89 {approx = true} : vector<8x16xf32> -> vector<8x16xf32>
      %91 = vector.extract_strided_slice %87 {offsets = [0, 0, 1], sizes = [8, 16, 1], strides = [1, 1, 1]} : vector<8x16x3xf32> to vector<8x16x1xf32>
      %92 = vector.shape_cast %91 : vector<8x16x1xf32> to vector<8x16xf32>
      %93 = arith.mulf %92, %90 : vector<8x16xf32>
      %94 = vector.extract_strided_slice %87 {offsets = [0, 0, 2], sizes = [8, 16, 1], strides = [1, 1, 1]} : vector<8x16x3xf32> to vector<8x16x1xf32>
      %95 = vector.shape_cast %94 : vector<8x16x1xf32> to vector<8x16xf32>
      %96 = arith.mulf %95, %90 : vector<8x16xf32>
      %97 = tpu.concatenate %93, %96, %90 in 1 : vector<8x16xf32>, vector<8x16xf32>, vector<8x16xf32> -> vector<8x48xf32>
      %c0_50 = arith.constant 0 : index
      %c0_51 = arith.constant 0 : index
      %c0_52 = arith.constant 0 : index
      %98 = vector.load %arg10[%c0_50, %c0_51, %c0_52] : memref<1x8x48xf32, #tpu.memory_space<vmem>>, vector<1x8x48xf32>
      %99 = vector.shape_cast %98 : vector<1x8x48xf32> to vector<8x48xf32>
      %100 = vector.shape_cast %97 : vector<8x48xf32> to vector<1x8x48xf32>
      tpu.vector_store %arg10[%c0_50, %c0_51, %c0_52], %100 {strides = array<i32>} : memref<1x8x48xf32, #tpu.memory_space<vmem>>, vector<1x8x48xf32>,
    } else {
    }
    return
  }
  func.func @transform_0(%arg0: i32, %arg1: i32, %arg2: i32) -> (i32, i32, i32, i32) {
    %c0_i32 = arith.constant 0 : i32
    %c0_i32_0 = arith.constant 0 : i32
    return %arg0, %c0_i32, %arg1, %arg2 : i32, i32, i32, i32
  }
  func.func @transform_1(%arg0: i32, %arg1: i32, %arg2: i32) -> (i32, i32) {
    %c0_i32 = arith.constant 0 : i32
    %c0_i32_0 = arith.constant 0 : i32
    return %c0_i32, %arg2 : i32, i32
  }
  func.func @transform_2(%arg0: i32, %arg1: i32, %arg2: i32) -> (i32, i32) {
    %c0_i32 = arith.constant 0 : i32
    %c0_i32_0 = arith.constant 0 : i32
    %c0_i32_1 = arith.constant 0 : i32
    return %c0_i32, %c0_i32_0 : i32, i32
  }
  func.func @transform_3(%arg0: i32, %arg1: i32, %arg2: i32) -> (i32, i32) {
    %c0_i32 = arith.constant 0 : i32
    %c0_i32_0 = arith.constant 0 : i32
    %c0_i32_1 = arith.constant 0 : i32
    return %c0_i32, %c0_i32_0 : i32, i32
  }
  func.func @transform_4(%arg0: i32, %arg1: i32, %arg2: i32) -> (i32, i32) {
    %c0_i32 = arith.constant 0 : i32
    %c0_i32_0 = arith.constant 0 : i32
    %c0_i32_1 = arith.constant 0 : i32
    return %c0_i32, %c0_i32_0 : i32, i32
  }
  func.func @transform_5(%arg0: i32, %arg1: i32, %arg2: i32) -> (i32, i32) {
    %c0_i32 = arith.constant 0 : i32
    %c0_i32_0 = arith.constant 0 : i32
    %c0_i32_1 = arith.constant 0 : i32
    return %c0_i32, %c0_i32_0 : i32, i32
  }
  func.func @transform_6(%arg0: i32, %arg1: i32, %arg2: i32) -> (i32, i32, i32) {
    %c0_i32 = arith.constant 0 : i32
    return %arg0, %arg1, %arg2 : i32, i32, i32
  }
  func.func @transform_7(%arg0: i32, %arg1: i32, %arg2: i32) -> (i32, i32, i32) {
    %c0_i32 = arith.constant 0 : i32
    %c0_i32_0 = arith.constant 0 : i32
    return %arg0, %arg1, %c0_i32 : i32, i32, i32
  }
}

</mosaic_0001>

<llo_original>
// kernel: tpu_custom_call.1
$region0: #{tpu_custom_call.1}
  #allocation0 [shape = 'u32[]', space=smem, size = 0x4, offset = 0x4, fixed_abs, tag = 'smem constant byte address 0x4 - core index']
  #allocation1 [shape = 'u32[144,128]{1,0:T(1,128)}', space=vmem, size = 0x12000, scoped, tag = 'internal scratch']
  #allocation2 [shape = 'f32[8,16]{1,0:T(8,128)}', space=vmem, size = 0x1000, scoped, tag = 'scratch operand']
  #allocation3 [shape = 'f32[8,16,3]{2,1,0:T(8,128)}', space=vmem, size = 0x10000, scoped, tag = 'scratch operand']
  #allocation4 [shape = 'f32[1,1]{1,0:T(1,128)S(1)}', space=vmem, size = 0x200, scoped, tag = 'scoped memory for tpu_custom_call.1']
  %s0 = inlined_call_operand.hbm [shape: f32[2,3,8,256], index: 0, kind: input, shape index: {}]
  %s1 = inlined_call_operand.vmem [shape: f32[3,256], index: 1, kind: input, shape index: {}]
  %s2 = inlined_call_operand.vmem [shape: f32[3,1], index: 2, kind: input, shape index: {}]
  %s3 = inlined_call_operand.<no memory space> [shape: f32[1,1], index: 3, kind: input, shape index: {}]
  %s4 = inlined_call_operand.vmem [shape: f32[16,3], index: 4, kind: input, shape index: {}]
  %s5 = inlined_call_operand.vmem [shape: f32[16,1], index: 5, kind: input, shape index: {}]
  %s6 = inlined_call_operand.hbm [shape: f32[2,8,256], index: 6, kind: output, shape index: {0}]
  %s7 = inlined_call_operand.hbm [shape: f32[2,8,48], index: 7, kind: output, shape index: {1}]
  %8 = xla_tuple %s6, %s7
  %s9 = sld [smem:[#allocation0]]
  $region77: #{tpu_custom_call.1} parent=0
    _
  %s11 = ssub.s32 1, %s9
  %s12 = scalar_select 0, %s11, %s9
  %v13 = vstv %s3
  %14 = vst [vmem:[#allocation4] sm:$0x1] %v13
  $region1: #{tpu_custom_call.1} parent=0
    #allocation5 [shape = 'u8[49152]{0}', space=vmem, size = 0xc000, scoped, tag = 'input window, operand 0']
    #allocation6 [shape = 's32[2]{0}', space=sflag, size = 0x8, scoped, tag = 'scoped memory for tpu_custom_call.1']
    #allocation7 [shape = 's32[2]{0}', space=sflag, size = 0x8, scoped, tag = 'scoped memory for tpu_custom_call.1']
    #allocation8 [shape = 'u8[16384]{0}', space=vmem, size = 0x4000, scoped, tag = 'output window, operand 0']
    #allocation9 [shape = 'u8[8192]{0}', space=vmem, size = 0x2000, scoped, tag = 'output window, operand 1']
    #allocation10 [shape = 's32[2]{0}', space=sflag, size = 0x8, scoped, tag = 'scoped memory for tpu_custom_call.1']
    %15 = vsyncpa [#allocation6], 0
    %s16 = scalar_lea.sflag [#allocation6], 1
    %17 = vsyncpa %s16, 0
    %18 = vsyncpa [#allocation7], 0
    %s19 = scalar_lea.sflag [#allocation7], 1
    %20 = vsyncpa %s19, 0
    %21 = vsyncpa [#allocation10], 0
    %s22 = scalar_lea.sflag [#allocation10], 1
    %23 = vsyncpa %s22, 0
    loop: start=0, step=1, limit=4
    $region2: #{tpu_custom_call.1} parent=1 // loop_pre_header
      _
    $region3: #{tpu_custom_call.1} parent=1 // loop_header
      %s25 = sphi 0, %s29
      %p26 = scmp.ge.s32.totalorder %s25, 4
      %s32 = sphi 0, %s51
      %s33 = sphi 0, %s47
      %s34 = sphi 0, %s43
      %s35 = sphi 0, %s32
      %s36 = sphi 0, %s33
      %s37 = sphi 0, %s34
      %s38 = sphi 0, %s35
      %s39 = sphi 0, %s36
      %s40 = sphi 0, %s37
      %s58 = sphi 0, %s60
      %s61 = sphi 0, %s58
      %s62 = sphi 0, %s61
      %s78 = sphi 0, %s62
      %s84 = sphi 0, %s86
      %s87 = sphi 0, %s84
      %s88 = sphi 0, %s87
      %s104 = sphi 0, %s88
      %s108 = sphi 0, %s108
      %s110 = sphi 0, %s108
      %s111 = sphi 0, %s110
      %s125 = sphi 0, %s111
      %s129 = sphi 0, %s129
      %s131 = sphi 0, %s129
      %s132 = sphi 0, %s131
      %s146 = sphi 0, %s132
      %s150 = sphi 0, %s150
      %s152 = sphi 0, %s150
      %s153 = sphi 0, %s152
      %s167 = sphi 0, %s153
      %s171 = sphi 0, %s171
      %s173 = sphi 0, %s171
      %s174 = sphi 0, %s173
      %s188 = sphi 0, %s174
      %s198 = sphi 0, %s200
      %s201 = sphi 0, %s198
      %s202 = sphi 0, %s201
      %s218 = sphi 0, %s202
      %s226 = sphi 0, %s228
      %s229 = sphi 0, %s226
      %s230 = sphi 0, %s229
      %s246 = sphi 0, %s230
    $region4: #{tpu_custom_call.1} parent=1 // loop_header_branch
      %28 = sbr.rel (%p26) target = $region8
    $region5: #{tpu_custom_call.1} parent=1 // loop_body
      %s30 = ssub.s32 %s25, 1
      %s31 = ssub.s32 %s25, 2
      %s41 = sadd.s32 1, %s34
      %p42 = scmp.ge.s32.totalorder %s41, 1
      %s43 = scalar_select %p42, 0, %s41
      %s44 = sadd.s32 1, %s33
      %s45 = scalar_select %p42, %s44, %s33
      %p46 = scmp.ge.s32.totalorder %s45, 1
      %s47 = scalar_select %p46, 0, %s45
      %s48 = sadd.s32 1, %s32
      %s49 = scalar_select %p46, %s48, %s32
      %p50 = scmp.ge.s32.totalorder %s49, 2
      %s51 = scalar_select %p50, 0, %s49
      %s52 = ssub.s32 %s32, %s51
      %s53 = ssub.s32 %s33, %s47
      %s54 = sor.u32 %s52, %s53
      %s55 = ssub.s32 %s34, %s43
      %s56 = sor.u32 %s54, %s55
      %p57 = scmp.eq.s32.totalorder %s56, 0
      %s59 = sadd.s32 %s58, 1
      %s60 = scalar_select %p57, %s58, %s59
      %p63 = pneg %p57
      %p64 = scmp.eq.s32.totalorder %s25, 1
      %p65 = por %p63, %p64
      %p66 = scmp.ne.s32.totalorder %s58, %s61
      %p67 = scmp.eq.s32.totalorder %s25, 0
      %p68 = por %p66, %p67
      %p69 = scmp.ne.s32.totalorder %s58, %s61
      %p70 = scmp.eq.s32.totalorder %s30, 1
      %p71 = por %p69, %p70
      %p72 = scmp.ne.s32.totalorder %s61, %s62
      %p73 = scmp.eq.s32.totalorder %s30, 0
      %p74 = por %p72, %p73
      %p75 = scmp.ne.s32.totalorder %s61, %s62
      %p76 = scmp.eq.s32.totalorder %s31, 1
      %p77 = por %p75, %p76
      %p79 = scmp.ne.s32.totalorder %s62, %s78
      %p80 = scmp.eq.s32.totalorder %s31, 0
      %p81 = por %p79, %p80
      %s82 = ssub.s32 %s34, %s43
      %p83 = scmp.eq.s32.totalorder %s82, 0
      %s85 = sadd.s32 %s84, 1
      %s86 = scalar_select %p83, %s84, %s85
      %p89 = pneg %p83
      %p90 = scmp.eq.s32.totalorder %s25, 1
      %p91 = por %p89, %p90
      %p92 = scmp.ne.s32.totalorder %s84, %s87
      %p93 = scmp.eq.s32.totalorder %s25, 0
      %p94 = por %p92, %p93
      %p95 = scmp.ne.s32.totalorder %s84, %s87
      %p96 = scmp.eq.s32.totalorder %s30, 1
      %p97 = por %p95, %p96
      %p98 = scmp.ne.s32.totalorder %s87, %s88
      %p99 = scmp.eq.s32.totalorder %s30, 0
      %p100 = por %p98, %p99
      %p101 = scmp.ne.s32.totalorder %s87, %s88
      %p102 = scmp.eq.s32.totalorder %s31, 1
      %p103 = por %p101, %p102
      %p105 = scmp.ne.s32.totalorder %s88, %s104
      %p106 = scmp.eq.s32.totalorder %s31, 0
      %p107 = por %p105, %p106
      %s109 = sadd.s32 %s108, 1
      %p112 = scmp.eq.s32.totalorder %s25, 1
      %p113 = scmp.ne.s32.totalorder %s108, %s110
      %p114 = scmp.eq.s32.totalorder %s25, 0
      %p115 = por %p113, %p114
      %p116 = scmp.ne.s32.totalorder %s108, %s110
      %p117 = scmp.eq.s32.totalorder %s30, 1
      %p118 = por %p116, %p117
      %p119 = scmp.ne.s32.totalorder %s110, %s111
      %p120 = scmp.eq.s32.totalorder %s30, 0
      %p121 = por %p119, %p120
      %p122 = scmp.ne.s32.totalorder %s110, %s111
      %p123 = scmp.eq.s32.totalorder %s31, 1
      %p124 = por %p122, %p123
      %p126 = scmp.ne.s32.totalorder %s111, %s125
      %p127 = scmp.eq.s32.totalorder %s31, 0
      %p128 = por %p126, %p127
      %s130 = sadd.s32 %s129, 1
      %p133 = scmp.eq.s32.totalorder %s25, 1
      %p134 = scmp.ne.s32.totalorder %s129, %s131
      %p135 = scmp.eq.s32.totalorder %s25, 0
      %p136 = por %p134, %p135
      %p137 = scmp.ne.s32.totalorder %s129, %s131
      %p138 = scmp.eq.s32.totalorder %s30, 1
      %p139 = por %p137, %p138
      %p140 = scmp.ne.s32.totalorder %s131, %s132
      %p141 = scmp.eq.s32.totalorder %s30, 0
      %p142 = por %p140, %p141
      %p143 = scmp.ne.s32.totalorder %s131, %s132
      %p144 = scmp.eq.s32.totalorder %s31, 1
      %p145 = por %p143, %p144
      %p147 = scmp.ne.s32.totalorder %s132, %s146
      %p148 = scmp.eq.s32.totalorder %s31, 0
      %p149 = por %p147, %p148
      %s151 = sadd.s32 %s150, 1
      %p154 = scmp.eq.s32.totalorder %s25, 1
      %p155 = scmp.ne.s32.totalorder %s150, %s152
      %p156 = scmp.eq.s32.totalorder %s25, 0
      %p157 = por %p155, %p156
      %p158 = scmp.ne.s32.totalorder %s150, %s152
      %p159 = scmp.eq.s32.totalorder %s30, 1
      %p160 = por %p158, %p159
      %p161 = scmp.ne.s32.totalorder %s152, %s153
      %p162 = scmp.eq.s32.totalorder %s30, 0
      %p163 = por %p161, %p162
      %p164 = scmp.ne.s32.totalorder %s152, %s153
      %p165 = scmp.eq.s32.totalorder %s31, 1
      %p166 = por %p164, %p165
      %p168 = scmp.ne.s32.totalorder %s153, %s167
      %p169 = scmp.eq.s32.totalorder %s31, 0
      %p170 = por %p168, %p169
      %s172 = sadd.s32 %s171, 1
      %p175 = scmp.eq.s32.totalorder %s25, 1
      %p176 = scmp.ne.s32.totalorder %s171, %s173
      %p177 = scmp.eq.s32.totalorder %s25, 0
      %p178 = por %p176, %p177
      %p179 = scmp.ne.s32.totalorder %s171, %s173
      %p180 = scmp.eq.s32.totalorder %s30, 1
      %p181 = por %p179, %p180
      %p182 = scmp.ne.s32.totalorder %s173, %s174
      %p183 = scmp.eq.s32.totalorder %s30, 0
      %p184 = por %p182, %p183
      %p185 = scmp.ne.s32.totalorder %s173, %s174
      %p186 = scmp.eq.s32.totalorder %s31, 1
      %p187 = por %p185, %p186
      %p189 = scmp.ne.s32.totalorder %s174, %s188
      %p190 = scmp.eq.s32.totalorder %s31, 0
      %p191 = por %p189, %p190
      %s192 = ssub.s32 %s32, %s51
      %s193 = ssub.s32 %s33, %s47
      %s194 = sor.u32 %s192, %s193
      %s195 = ssub.s32 %s34, %s43
      %s196 = sor.u32 %s194, %s195
      %p197 = scmp.eq.s32.totalorder %s196, 0
      %s199 = sadd.s32 %s198, 1
      %s200 = scalar_select %p197, %s198, %s199
      %p203 = pneg %p197
      %p204 = scmp.eq.s32.totalorder %s25, 1
      %p205 = por %p203, %p204
      %p206 = scmp.ne.s32.totalorder %s198, %s201
      %p207 = scmp.eq.s32.totalorder %s25, 0
      %p208 = por %p206, %p207
      %p209 = scmp.ne.s32.totalorder %s198, %s201
      %p210 = scmp.eq.s32.totalorder %s30, 1
      %p211 = por %p209, %p210
      %p212 = scmp.ne.s32.totalorder %s201, %s202
      %p213 = scmp.eq.s32.totalorder %s30, 0
      %p214 = por %p212, %p213
      %p215 = scmp.ne.s32.totalorder %s201, %s202
      %p216 = scmp.eq.s32.totalorder %s31, 1
      %p217 = por %p215, %p216
      %p219 = scmp.ne.s32.totalorder %s202, %s218
      %p220 = scmp.eq.s32.totalorder %s31, 0
      %p221 = por %p219, %p220
      %s222 = ssub.s32 %s32, %s51
      %s223 = ssub.s32 %s33, %s47
      %s224 = sor.u32 %s222, %s223
      %p225 = scmp.eq.s32.totalorder %s224, 0
      %s227 = sadd.s32 %s226, 1
      %s228 = scalar_select %p225, %s226, %s227
      %p231 = pneg %p225
      %p232 = scmp.eq.s32.totalorder %s25, 1
      %p233 = por %p231, %p232
      %p234 = scmp.ne.s32.totalorder %s226, %s229
      %p235 = scmp.eq.s32.totalorder %s25, 0
      %p236 = por %p234, %p235
      %p237 = scmp.ne.s32.totalorder %s226, %s229
      %p238 = scmp.eq.s32.totalorder %s30, 1
      %p239 = por %p237, %p238
      %p240 = scmp.ne.s32.totalorder %s229, %s230
      %p241 = scmp.eq.s32.totalorder %s30, 0
      %p242 = por %p240, %p241
      %p243 = scmp.ne.s32.totalorder %s229, %s230
      %p244 = scmp.eq.s32.totalorder %s31, 1
      %p245 = por %p243, %p244
      %p247 = scmp.ne.s32.totalorder %s230, %s246
      %p248 = scmp.eq.s32.totalorder %s31, 0
      %p249 = por %p247, %p248
      %p250 = scmp.le.s32.totalorder 1, %s25
      %p251 = scmp.lt.s32.totalorder %s25, 3
      %p252 = pnand %p250, %p251
      %p253 = pneg %p252
      // Predicated region
      $region9: #{tpu_custom_call.1} parent=5 // pred_check
        _
      $region10: #{tpu_custom_call.1} parent=5 // pred_check_branch
        %255 = sbr.rel (%p252) target = $region12
      $region11: #{tpu_custom_call.1} parent=5 // pred_region
        %s256 = ssub.s32 %s25, 1
        // Predicated region
        $region13: #{tpu_custom_call.1} parent=11 // pred_check
          %p257 = pneg %p100
        $region14: #{tpu_custom_call.1} parent=11 // pred_check_branch
          %259 = sbr.rel (%p257) target = $region16
        $region15: #{tpu_custom_call.1} parent=11 // pred_region
          %s260 = smul.u32 2, %s37
          %p261 = scmp.lt.s32.totalorder %s260, 1
          %s262 = scalar_select %p261, %s260, 1
          %s263 = smul.addr %s262, 4
          %s264 = scalar_lea.vmem %s1, %s263
          %s265 = smul.u32 2, %s37
        $region16: #{tpu_custom_call.1} parent=11 // pred_fallthru
          _
        // Predicated region
        $region17: #{tpu_custom_call.1} parent=11 // pred_check
          %p266 = pneg %p121
        $region18: #{tpu_custom_call.1} parent=11 // pred_check_branch
          %268 = sbr.rel (%p266) target = $region20
        $region19: #{tpu_custom_call.1} parent=11 // pred_region
          _
        $region20: #{tpu_custom_call.1} parent=11 // pred_fallthru
          _
        // Predicated region
        $region21: #{tpu_custom_call.1} parent=11 // pred_check
          %p269 = pneg %p142
        $region22: #{tpu_custom_call.1} parent=11 // pred_check_branch
          %271 = sbr.rel (%p269) target = $region24
        $region23: #{tpu_custom_call.1} parent=11 // pred_region
          _
        $region24: #{tpu_custom_call.1} parent=11 // pred_fallthru
          _
        // Predicated region
        $region25: #{tpu_custom_call.1} parent=11 // pred_check
          %p272 = pneg %p163
        $region26: #{tpu_custom_call.1} parent=11 // pred_check_branch
          %274 = sbr.rel (%p272) target = $region28
        $region27: #{tpu_custom_call.1} parent=11 // pred_region
          _
        $region28: #{tpu_custom_call.1} parent=11 // pred_fallthru
          _
        // Predicated region
        $region29: #{tpu_custom_call.1} parent=11 // pred_check
          %p275 = pneg %p184
        $region30: #{tpu_custom_call.1} parent=11 // pred_check_branch
          %277 = sbr.rel (%p275) target = $region32
        $region31: #{tpu_custom_call.1} parent=11 // pred_region
          _
        $region32: #{tpu_custom_call.1} parent=11 // pred_fallthru
          _
      $region12: #{tpu_custom_call.1} parent=5 // pred_fallthru
        _
      %p278 = scmp.lt.s32.totalorder %s25, 2
      // Predicated region
      $region33: #{tpu_custom_call.1} parent=5 // pred_check
        %p279 = pneg %p278
      $region34: #{tpu_custom_call.1} parent=5 // pred_check_branch
        %281 = sbr.rel (%p279) target = $region36
      $region35: #{tpu_custom_call.1} parent=5 // pred_region
        // Predicated region
        $region37: #{tpu_custom_call.1} parent=35 // pred_check
          %p282 = pneg %p68
        $region38: #{tpu_custom_call.1} parent=35 // pred_check_branch
          %284 = sbr.rel (%p282) target = $region40
        $region39: #{tpu_custom_call.1} parent=35 // pred_region
          %s285 = sand.u32 %s58, 1
          %s286 = scalar_lea.sflag [#allocation6], %s285
          %s287 = sand.u32 %s58, 1
          %s288 = smul.addr %s287, 48
          %s289 = scalar_lea.vmem [#allocation5], %s288
          %s290 = smul.u32 2, %s34
          %s292 = ssub.s32 768, 768
          %293 = vsyncadd %s286, %s292
          %s294 = smul.addr %s33, 2
          %s295 = sadd.s32 %s290, %s294
          %s296 = smul.addr %s32, 6
          %s297 = sadd.s32 %s295, %s296
          %s298 = smul.addr %s297, 128
          %s299 = scalar_lea.hbm %s0, %s298
          %s300 = sshll.u32 %s289, 4
          %s301 = int_to_ptr.vmem [resolvable:$true] %s300
          %306 = dma.hbm_to_vmem [thread:$0]  %s299, 768, %s301, %s286, 256, 256, 16
        $region40: #{tpu_custom_call.1} parent=35 // pred_fallthru
          _
      $region36: #{tpu_custom_call.1} parent=5 // pred_fallthru
        _
      %p307 = scmp.le.s32.totalorder 1, %s25
      %p308 = scmp.lt.s32.totalorder %s25, 3
      %p309 = pnand %p307, %p308
      %p310 = pneg %p309
      // Predicated region
      $region41: #{tpu_custom_call.1} parent=5 // pred_check
        _
      $region42: #{tpu_custom_call.1} parent=5 // pred_check_branch
        %312 = sbr.rel (%p309) target = $region44
      $region43: #{tpu_custom_call.1} parent=5 // pred_region
        %s313 = ssub.s32 %s25, 1
        %s314 = sand.u32 %s61, 1
        %s315 = scalar_lea.sflag [#allocation6], %s314
        %s316 = sand.u32 %s61, 1
        %s317 = smul.addr %s316, 48
        %s318 = scalar_lea.vmem [#allocation5], %s317
        // Predicated region
        $region45: #{tpu_custom_call.1} parent=43 // pred_check
          %p319 = pneg %p74
        $region46: #{tpu_custom_call.1} parent=43 // pred_check_branch
          %321 = sbr.rel (%p319) target = $region48
        $region47: #{tpu_custom_call.1} parent=43 // pred_region
          %322 = dma.done %s315, 768
        $region48: #{tpu_custom_call.1} parent=43 // pred_fallthru
          _
        %s323 = sand.u32 %s61, 1
        %s324 = scalar_lea.sflag [#allocation6], %s323
        %s325 = sand.u32 %s61, 1
        %s326 = smul.addr %s325, 48
        %s327 = scalar_lea.vmem [#allocation5], %s326
        %p328 = pneg %p74
        %p329 = pneg %p71
        %s330 = smul.u32 2, %s37
        %p331 = scmp.lt.s32.totalorder %s330, 1
        %s332 = scalar_select %p331, %s330, 1
        %s333 = smul.addr %s332, 4
        %s334 = scalar_lea.vmem %s1, %s333
        %p335 = pneg %p100
        %p336 = pneg %p97
        %p337 = pneg %p121
        %p338 = pneg %p118
        %p339 = pneg %p142
        %p340 = pneg %p139
        %p341 = pneg %p163
        %p342 = pneg %p160
        %p343 = pneg %p184
        %p344 = pneg %p181
        %p345 = pneg %p214
        %p346 = pneg %p211
        %s347 = sand.u32 %s201, 1
        %s348 = scalar_lea.sflag [#allocation7], %s347
        %s349 = sand.u32 %s201, 1
        %s350 = smul.addr %s349, 16
        %s351 = scalar_lea.vmem [#allocation8], %s350
        %p352 = pneg %p242
        %p353 = pneg %p239
        %s354 = sand.u32 %s229, 1
        %s355 = scalar_lea.sflag [#allocation10], %s354
        %s356 = sand.u32 %s229, 1
        %s357 = smul.addr %s356, 8
        %s358 = scalar_lea.vmem [#allocation9], %s357
        %s359 = smul.u32 2, %s37
        %s360 = smul.u32 2, %s37
        %p361 = scmp.lt.s32.totalorder %s360, 1
        %s362 = scalar_select %p361, %s360, 1
        %s363 = smul.addr %s362, 4
        %s364 = scalar_lea.vmem %s1, %s363
        %s365 = smul.u32 2, %s37
        %s366 = smul.u32 2, %s37
        %v367 = vld [vmem:[%s5] sm:$0xff]
        %v368 = vld [vmem:[%s5 + $0x8] sm:$0xff]
        %v369 = vld [vmem:[%s318] sm:$0xff]
        %v370 = vld [vmem:[%s318 + $0x8] sm:$0xff]
        %v371 = vld [vmem:[%s4] sm:$0xff]
        %v372 = vld [vmem:[%s4 + $0x8] sm:$0xff]
        %v373 = vld [vmem:[%s2] sm:$0x1]
        %s375 = vtos %v373
        %v376 = vstv %s375
        %v378 = vmul.f32 %v369, %v376
        %v379 = vmul.f32 %v370, %v376
        %v380 = vld [vmem:[#allocation4] sm:$0x1]
        %v382 = vlaneseq
        %v383 = vshrl.u32 %v382, 7
        %v384 = vsub.s32 0, %v383
        %v385 = vrot.slane %v380, %v384
        %386 = vset.pattern.permute.xlu0 0
        %387 = vperm.xlu0 %386, %v385
        %v388 = vpop.permute.xlu0 %387
        %v390 = vadd.f32 %v378, %v388
        %v391 = vadd.f32 %v379, %v388
        %v394 = vcombine.low %v369, %v370
        %v395 = vcombine.high %v369, %v370
        %v397 = vunpack.c.l.s4 1966171168
        %v398 = vunpack.c.0.s8 %v397
        %v399 = vlaneseq
        %v400 = vshrl.u32 %v399, 7
        %v401 = vsub.s32 %v398, %v400
        %v402 = vrot.slane %v394, %v401
        %v404 = vunpack.c.l.s4 1966171168
        %v405 = vunpack.c.0.s8 %v404
        %v406 = vlaneseq
        %v407 = vshrl.u32 %v406, 7
        %v408 = vsub.s32 %v405, %v407
        %v409 = vrot.slane %v395, %v408
        %v410 = vcombine.high %v402, %v402
        %v411 = vcombine.high %v409, %v409
        %v413 = vunpack.c.l.s4 1966171168
        %v414 = vunpack.c.0.s8 %v413
        %v415 = vlaneseq
        %v416 = vshrl.u32 %v415, 7
        %v417 = vsub.s32 %v414, %v416
        %v418 = vrot.slane %v402, %v417
        %v420 = vunpack.c.l.s4 1966171168
        %v421 = vunpack.c.0.s8 %v420
        %v422 = vlaneseq
        %v423 = vshrl.u32 %v422, 7
        %v424 = vsub.s32 %v421, %v423
        %v425 = vrot.slane %v409, %v424
        %v427 = vunpack.c.l.s4 1966171168
        %v428 = vunpack.c.0.s8 %v427
        %v429 = vlaneseq
        %v430 = vshrl.u32 %v429, 7
        %v431 = vsub.s32 %v428, %v430
        %v432 = vrot.slane %v410, %v431
        %v434 = vunpack.c.l.s4 1966171168
        %v435 = vunpack.c.0.s8 %v434
        %v436 = vlaneseq
        %v437 = vshrl.u32 %v436, 7
        %v438 = vsub.s32 %v435, %v437
        %v439 = vrot.slane %v411, %v438
        %v440 = vcombine.high %v418, %v418
        %v441 = vcombine.high %v425, %v425
        %v442 = vcombine.high %v432, %v432
        %v443 = vcombine.high %v439, %v439
        %v444 = vlaneseq
        %v445 = vshrl.u32 %v444, 7
        %v446 = vsub.s32 0, %v445
        %v447 = vrot.slane %v418, %v446
        %v448 = vlaneseq
        %v449 = vshrl.u32 %v448, 7
        %v450 = vsub.s32 1, %v449
        %v451 = vrot.slane %v418, %v450
        %v452 = vlaneseq
        %v453 = vshrl.u32 %v452, 7
        %v454 = vsub.s32 0, %v453
        %v455 = vrot.slane %v432, %v454
        %v456 = vlaneseq
        %v457 = vshrl.u32 %v456, 7
        %v458 = vsub.s32 1, %v457
        %v459 = vrot.slane %v432, %v458
        %v460 = vlaneseq
        %v461 = vshrl.u32 %v460, 7
        %v462 = vsub.s32 0, %v461
        %v463 = vrot.slane %v440, %v462
        %v464 = vlaneseq
        %v465 = vshrl.u32 %v464, 7
        %v466 = vsub.s32 1, %v465
        %v467 = vrot.slane %v440, %v466
        %v468 = vlaneseq
        %v469 = vshrl.u32 %v468, 7
        %v470 = vsub.s32 0, %v469
        %v471 = vrot.slane %v442, %v470
        %v472 = vlaneseq
        %v473 = vshrl.u32 %v472, 7
        %v474 = vsub.s32 1, %v473
        %v475 = vrot.slane %v442, %v474
        %v476 = vlaneseq
        %v477 = vshrl.u32 %v476, 7
        %v478 = vsub.s32 0, %v477
        %v479 = vrot.slane %v425, %v478
        %v480 = vlaneseq
        %v481 = vshrl.u32 %v480, 7
        %v482 = vsub.s32 1, %v481
        %v483 = vrot.slane %v425, %v482
        %v484 = vlaneseq
        %v485 = vshrl.u32 %v484, 7
        %v486 = vsub.s32 0, %v485
        %v487 = vrot.slane %v439, %v486
        %v488 = vlaneseq
        %v489 = vshrl.u32 %v488, 7
        %v490 = vsub.s32 1, %v489
        %v491 = vrot.slane %v439, %v490
        %v492 = vlaneseq
        %v493 = vshrl.u32 %v492, 7
        %v494 = vsub.s32 0, %v493
        %v495 = vrot.slane %v441, %v494
        %v496 = vlaneseq
        %v497 = vshrl.u32 %v496, 7
        %v498 = vsub.s32 1, %v497
        %v499 = vrot.slane %v441, %v498
        %v500 = vlaneseq
        %v501 = vshrl.u32 %v500, 7
        %v502 = vsub.s32 0, %v501
        %v503 = vrot.slane %v443, %v502
        %v504 = vlaneseq
        %v505 = vshrl.u32 %v504, 7
        %v506 = vsub.s32 1, %v505
        %v507 = vrot.slane %v443, %v506
        %525 = vset.pattern.permute.xlu0 0
        %526 = vperm.xlu0 %525, %v371
        %v527 = vpop.permute.xlu0 %526
        %530 = vset.pattern.permute.xlu0 0
        %531 = vperm.xlu0 %530, %v372
        %v532 = vpop.permute.xlu0 %531
        %v534 = vmul.f32 %v447, %v527
        %v535 = vmul.f32 %v451, %v527
        %v536 = vmul.f32 %v447, %v532
        %v537 = vmul.f32 %v451, %v532
        %v538 = vmul.f32 %v455, %v527
        %v539 = vmul.f32 %v459, %v527
        %v540 = vmul.f32 %v455, %v532
        %v541 = vmul.f32 %v459, %v532
        %v542 = vmul.f32 %v463, %v527
        %v543 = vmul.f32 %v467, %v527
        %v544 = vmul.f32 %v463, %v532
        %v545 = vmul.f32 %v467, %v532
        %v546 = vmul.f32 %v471, %v527
        %v547 = vmul.f32 %v475, %v527
        %v548 = vmul.f32 %v471, %v532
        %v549 = vmul.f32 %v475, %v532
        %v550 = vmul.f32 %v479, %v527
        %v551 = vmul.f32 %v483, %v527
        %v552 = vmul.f32 %v479, %v532
        %v553 = vmul.f32 %v483, %v532
        %v554 = vmul.f32 %v487, %v527
        %v555 = vmul.f32 %v491, %v527
        %v556 = vmul.f32 %v487, %v532
        %v557 = vmul.f32 %v491, %v532
        %v558 = vmul.f32 %v495, %v527
        %v559 = vmul.f32 %v499, %v527
        %v560 = vmul.f32 %v495, %v532
        %v561 = vmul.f32 %v499, %v532
        %v562 = vmul.f32 %v503, %v527
        %v563 = vmul.f32 %v507, %v527
        %v564 = vmul.f32 %v503, %v532
        %v565 = vmul.f32 %v507, %v532
        %567 = vset.pattern.permute.xlu0 0
        %568 = vperm.xlu0 %567, %v367
        %v569 = vpop.permute.xlu0 %568
        %572 = vset.pattern.permute.xlu0 0
        %573 = vperm.xlu0 %572, %v368
        %v574 = vpop.permute.xlu0 %573
        %v576 = vadd.f32 %v534, %v569
        %v577 = vadd.f32 %v535, %v569
        %v578 = vadd.f32 %v536, %v574
        %v579 = vadd.f32 %v537, %v574
        %v580 = vadd.f32 %v538, %v569
        %v581 = vadd.f32 %v539, %v569
        %v582 = vadd.f32 %v540, %v574
        %v583 = vadd.f32 %v541, %v574
        %v584 = vadd.f32 %v542, %v569
        %v585 = vadd.f32 %v543, %v569
        %v586 = vadd.f32 %v544, %v574
        %v587 = vadd.f32 %v545, %v574
        %v588 = vadd.f32 %v546, %v569
        %v589 = vadd.f32 %v547, %v569
        %v590 = vadd.f32 %v548, %v574
        %v591 = vadd.f32 %v549, %v574
        %v592 = vadd.f32 %v550, %v569
        %v593 = vadd.f32 %v551, %v569
        %v594 = vadd.f32 %v552, %v574
        %v595 = vadd.f32 %v553, %v574
        %v596 = vadd.f32 %v554, %v569
        %v597 = vadd.f32 %v555, %v569
        %v598 = vadd.f32 %v556, %v574
        %v599 = vadd.f32 %v557, %v574
        %v600 = vadd.f32 %v558, %v569
        %v601 = vadd.f32 %v559, %v569
        %v602 = vadd.f32 %v560, %v574
        %v603 = vadd.f32 %v561, %v574
        %v604 = vadd.f32 %v562, %v569
        %v605 = vadd.f32 %v563, %v569
        %v606 = vadd.f32 %v564, %v574
        %v607 = vadd.f32 %v565, %v574
        %s608 = scalar_lea.vmem %s318, 16 [#allocation5]
        %v609 = vld [vmem:[%s608] sm:$0xff]
        %v610 = vld [vmem:[%s608 + $0x8] sm:$0xff]
        %v611 = vld [vmem:[%s4] sm:$0xff]
        %v612 = vld [vmem:[%s4 + $0x8] sm:$0xff]
        %v613 = vld [vmem:[%s2 + $0x1] sm:$0x1]
        %s615 = vtos %v613
        %v616 = vstv %s615
        %v618 = vmul.f32 %v609, %v616
        %v619 = vmul.f32 %v610, %v616
        %v620 = vadd.f32 %v390, %v618
        %v621 = vadd.f32 %v391, %v619
        %v624 = vcombine.low %v609, %v610
        %v625 = vcombine.high %v609, %v610
        %v627 = vunpack.c.l.s4 1966171168
        %v628 = vunpack.c.0.s8 %v627
        %v629 = vlaneseq
        %v630 = vshrl.u32 %v629, 7
        %v631 = vsub.s32 %v628, %v630
        %v632 = vrot.slane %v624, %v631
        %v634 = vunpack.c.l.s4 1966171168
        %v635 = vunpack.c.0.s8 %v634
        %v636 = vlaneseq
        %v637 = vshrl.u32 %v636, 7
        %v638 = vsub.s32 %v635, %v637
        %v639 = vrot.slane %v625, %v638
        %v640 = vcombine.high %v632, %v632
        %v641 = vcombine.high %v639, %v639
        %v643 = vunpack.c.l.s4 1966171168
        %v644 = vunpack.c.0.s8 %v643
        %v645 = vlaneseq
        %v646 = vshrl.u32 %v645, 7
        %v647 = vsub.s32 %v644, %v646
        %v648 = vrot.slane %v632, %v647
        %v650 = vunpack.c.l.s4 1966171168
        %v651 = vunpack.c.0.s8 %v650
        %v652 = vlaneseq
        %v653 = vshrl.u32 %v652, 7
        %v654 = vsub.s32 %v651, %v653
        %v655 = vrot.slane %v639, %v654
        %v657 = vunpack.c.l.s4 1966171168
        %v658 = vunpack.c.0.s8 %v657
        %v659 = vlaneseq
        %v660 = vshrl.u32 %v659, 7
        %v661 = vsub.s32 %v658, %v660
        %v662 = vrot.slane %v640, %v661
        %v664 = vunpack.c.l.s4 1966171168
        %v665 = vunpack.c.0.s8 %v664
        %v666 = vlaneseq
        %v667 = vshrl.u32 %v666, 7
        %v668 = vsub.s32 %v665, %v667
        %v669 = vrot.slane %v641, %v668
        %v670 = vcombine.high %v648, %v648
        %v671 = vcombine.high %v655, %v655
        %v672 = vcombine.high %v662, %v662
        %v673 = vcombine.high %v669, %v669
        %v674 = vlaneseq
        %v675 = vshrl.u32 %v674, 7
        %v676 = vsub.s32 0, %v675
        %v677 = vrot.slane %v648, %v676
        %v678 = vlaneseq
        %v679 = vshrl.u32 %v678, 7
        %v680 = vsub.s32 1, %v679
        %v681 = vrot.slane %v648, %v680
        %v682 = vlaneseq
        %v683 = vshrl.u32 %v682, 7
        %v684 = vsub.s32 0, %v683
        %v685 = vrot.slane %v662, %v684
        %v686 = vlaneseq
        %v687 = vshrl.u32 %v686, 7
        %v688 = vsub.s32 1, %v687
        %v689 = vrot.slane %v662, %v688
        %v690 = vlaneseq
        %v691 = vshrl.u32 %v690, 7
        %v692 = vsub.s32 0, %v691
        %v693 = vrot.slane %v670, %v692
        %v694 = vlaneseq
        %v695 = vshrl.u32 %v694, 7
        %v696 = vsub.s32 1, %v695
        %v697 = vrot.slane %v670, %v696
        %v698 = vlaneseq
        %v699 = vshrl.u32 %v698, 7
        %v700 = vsub.s32 0, %v699
        %v701 = vrot.slane %v672, %v700
        %v702 = vlaneseq
        %v703 = vshrl.u32 %v702, 7
        %v704 = vsub.s32 1, %v703
        %v705 = vrot.slane %v672, %v704
        %v706 = vlaneseq
        %v707 = vshrl.u32 %v706, 7
        %v708 = vsub.s32 0, %v707
        %v709 = vrot.slane %v655, %v708
        %v710 = vlaneseq
        %v711 = vshrl.u32 %v710, 7
        %v712 = vsub.s32 1, %v711
        %v713 = vrot.slane %v655, %v712
        %v714 = vlaneseq
        %v715 = vshrl.u32 %v714, 7
        %v716 = vsub.s32 0, %v715
        %v717 = vrot.slane %v669, %v716
        %v718 = vlaneseq
        %v719 = vshrl.u32 %v718, 7
        %v720 = vsub.s32 1, %v719
        %v721 = vrot.slane %v669, %v720
        %v722 = vlaneseq
        %v723 = vshrl.u32 %v722, 7
        %v724 = vsub.s32 0, %v723
        %v725 = vrot.slane %v671, %v724
        %v726 = vlaneseq
        %v727 = vshrl.u32 %v726, 7
        %v728 = vsub.s32 1, %v727
        %v729 = vrot.slane %v671, %v728
        %v730 = vlaneseq
        %v731 = vshrl.u32 %v730, 7
        %v732 = vsub.s32 0, %v731
        %v733 = vrot.slane %v673, %v732
        %v734 = vlaneseq
        %v735 = vshrl.u32 %v734, 7
        %v736 = vsub.s32 1, %v735
        %v737 = vrot.slane %v673, %v736
        %755 = vset.pattern.permute.xlu0 1
        %756 = vperm.xlu0 %755, %v611
        %v757 = vpop.permute.xlu0 %756
        %760 = vset.pattern.permute.xlu0 1
        %761 = vperm.xlu0 %760, %v612
        %v762 = vpop.permute.xlu0 %761
        %v764 = vmul.f32 %v677, %v757
        %v765 = vmul.f32 %v681, %v757
        %v766 = vmul.f32 %v677, %v762
        %v767 = vmul.f32 %v681, %v762
        %v768 = vmul.f32 %v685, %v757
        %v769 = vmul.f32 %v689, %v757
        %v770 = vmul.f32 %v685, %v762
        %v771 = vmul.f32 %v689, %v762
        %v772 = vmul.f32 %v693, %v757
        %v773 = vmul.f32 %v697, %v757
        %v774 = vmul.f32 %v693, %v762
        %v775 = vmul.f32 %v697, %v762
        %v776 = vmul.f32 %v701, %v757
        %v777 = vmul.f32 %v705, %v757
        %v778 = vmul.f32 %v701, %v762
        %v779 = vmul.f32 %v705, %v762
        %v780 = vmul.f32 %v709, %v757
        %v781 = vmul.f32 %v713, %v757
        %v782 = vmul.f32 %v709, %v762
        %v783 = vmul.f32 %v713, %v762
        %v784 = vmul.f32 %v717, %v757
        %v785 = vmul.f32 %v721, %v757
        %v786 = vmul.f32 %v717, %v762
        %v787 = vmul.f32 %v721, %v762
        %v788 = vmul.f32 %v725, %v757
        %v789 = vmul.f32 %v729, %v757
        %v790 = vmul.f32 %v725, %v762
        %v791 = vmul.f32 %v729, %v762
        %v792 = vmul.f32 %v733, %v757
        %v793 = vmul.f32 %v737, %v757
        %v794 = vmul.f32 %v733, %v762
        %v795 = vmul.f32 %v737, %v762
        %v796 = vadd.f32 %v576, %v764
        %v797 = vadd.f32 %v577, %v765
        %v798 = vadd.f32 %v578, %v766
        %v799 = vadd.f32 %v579, %v767
        %v800 = vadd.f32 %v580, %v768
        %v801 = vadd.f32 %v581, %v769
        %v802 = vadd.f32 %v582, %v770
        %v803 = vadd.f32 %v583, %v771
        %v804 = vadd.f32 %v584, %v772
        %v805 = vadd.f32 %v585, %v773
        %v806 = vadd.f32 %v586, %v774
        %v807 = vadd.f32 %v587, %v775
        %v808 = vadd.f32 %v588, %v776
        %v809 = vadd.f32 %v589, %v777
        %v810 = vadd.f32 %v590, %v778
        %v811 = vadd.f32 %v591, %v779
        %v812 = vadd.f32 %v592, %v780
        %v813 = vadd.f32 %v593, %v781
        %v814 = vadd.f32 %v594, %v782
        %v815 = vadd.f32 %v595, %v783
        %v816 = vadd.f32 %v596, %v784
        %v817 = vadd.f32 %v597, %v785
        %v818 = vadd.f32 %v598, %v786
        %v819 = vadd.f32 %v599, %v787
        %v820 = vadd.f32 %v600, %v788
        %v821 = vadd.f32 %v601, %v789
        %v822 = vadd.f32 %v602, %v790
        %v823 = vadd.f32 %v603, %v791
        %v824 = vadd.f32 %v604, %v792
        %v825 = vadd.f32 %v605, %v793
        %v826 = vadd.f32 %v606, %v794
        %v827 = vadd.f32 %v607, %v795
        %s828 = scalar_lea.vmem %s318, 32 [#allocation5]
        %v829 = vld [vmem:[%s828] sm:$0xff]
        %v830 = vld [vmem:[%s828 + $0x8] sm:$0xff]
        %v831 = vld [vmem:[%s4] sm:$0xff]
        %v832 = vld [vmem:[%s4 + $0x8] sm:$0xff]
        %v833 = vld [vmem:[%s2 + $0x2] sm:$0x1]
        %s835 = vtos %v833
        %v836 = vstv %s835
        %v838 = vmul.f32 %v829, %v836
        %v839 = vmul.f32 %v830, %v836
        %v840 = vadd.f32 %v620, %v838
        %v841 = vadd.f32 %v621, %v839
        %v844 = vcombine.low %v829, %v830
        %v845 = vcombine.high %v829, %v830
        %v847 = vunpack.c.l.s4 1966171168
        %v848 = vunpack.c.0.s8 %v847
        %v849 = vlaneseq
        %v850 = vshrl.u32 %v849, 7
        %v851 = vsub.s32 %v848, %v850
        %v852 = vrot.slane %v844, %v851
        %v854 = vunpack.c.l.s4 1966171168
        %v855 = vunpack.c.0.s8 %v854
        %v856 = vlaneseq
        %v857 = vshrl.u32 %v856, 7
        %v858 = vsub.s32 %v855, %v857
        %v859 = vrot.slane %v845, %v858
        %v860 = vcombine.high %v852, %v852
        %v861 = vcombine.high %v859, %v859
        %v863 = vunpack.c.l.s4 1966171168
        %v864 = vunpack.c.0.s8 %v863
        %v865 = vlaneseq
        %v866 = vshrl.u32 %v865, 7
        %v867 = vsub.s32 %v864, %v866
        %v868 = vrot.slane %v852, %v867
        %v870 = vunpack.c.l.s4 1966171168
        %v871 = vunpack.c.0.s8 %v870
        %v872 = vlaneseq
        %v873 = vshrl.u32 %v872, 7
        %v874 = vsub.s32 %v871, %v873
        %v875 = vrot.slane %v859, %v874
        %v877 = vunpack.c.l.s4 1966171168
        %v878 = vunpack.c.0.s8 %v877
        %v879 = vlaneseq
        %v880 = vshrl.u32 %v879, 7
        %v881 = vsub.s32 %v878, %v880
        %v882 = vrot.slane %v860, %v881
        %v884 = vunpack.c.l.s4 1966171168
        %v885 = vunpack.c.0.s8 %v884
        %v886 = vlaneseq
        %v887 = vshrl.u32 %v886, 7
        %v888 = vsub.s32 %v885, %v887
        %v889 = vrot.slane %v861, %v888
        %v890 = vcombine.high %v868, %v868
        %v891 = vcombine.high %v875, %v875
        %v892 = vcombine.high %v882, %v882
        %v893 = vcombine.high %v889, %v889
        %v894 = vlaneseq
        %v895 = vshrl.u32 %v894, 7
        %v896 = vsub.s32 0, %v895
        %v897 = vrot.slane %v868, %v896
        %v898 = vlaneseq
        %v899 = vshrl.u32 %v898, 7
        %v900 = vsub.s32 1, %v899
        %v901 = vrot.slane %v868, %v900
        %v902 = vlaneseq
        %v903 = vshrl.u32 %v902, 7
        %v904 = vsub.s32 0, %v903
        %v905 = vrot.slane %v882, %v904
        %v906 = vlaneseq
        %v907 = vshrl.u32 %v906, 7
        %v908 = vsub.s32 1, %v907
        %v909 = vrot.slane %v882, %v908
        %v910 = vlaneseq
        %v911 = vshrl.u32 %v910, 7
        %v912 = vsub.s32 0, %v911
        %v913 = vrot.slane %v890, %v912
        %v914 = vlaneseq
        %v915 = vshrl.u32 %v914, 7
        %v916 = vsub.s32 1, %v915
        %v917 = vrot.slane %v890, %v916
        %v918 = vlaneseq
        %v919 = vshrl.u32 %v918, 7
        %v920 = vsub.s32 0, %v919
        %v921 = vrot.slane %v892, %v920
        %v922 = vlaneseq
        %v923 = vshrl.u32 %v922, 7
        %v924 = vsub.s32 1, %v923
        %v925 = vrot.slane %v892, %v924
        %v926 = vlaneseq
        %v927 = vshrl.u32 %v926, 7
        %v928 = vsub.s32 0, %v927
        %v929 = vrot.slane %v875, %v928
        %v930 = vlaneseq
        %v931 = vshrl.u32 %v930, 7
        %v932 = vsub.s32 1, %v931
        %v933 = vrot.slane %v875, %v932
        %v934 = vlaneseq
        %v935 = vshrl.u32 %v934, 7
        %v936 = vsub.s32 0, %v935
        %v937 = vrot.slane %v889, %v936
        %v938 = vlaneseq
        %v939 = vshrl.u32 %v938, 7
        %v940 = vsub.s32 1, %v939
        %v941 = vrot.slane %v889, %v940
        %v942 = vlaneseq
        %v943 = vshrl.u32 %v942, 7
        %v944 = vsub.s32 0, %v943
        %v945 = vrot.slane %v891, %v944
        %v946 = vlaneseq
        %v947 = vshrl.u32 %v946, 7
        %v948 = vsub.s32 1, %v947
        %v949 = vrot.slane %v891, %v948
        %v950 = vlaneseq
        %v951 = vshrl.u32 %v950, 7
        %v952 = vsub.s32 0, %v951
        %v953 = vrot.slane %v893, %v952
        %v954 = vlaneseq
        %v955 = vshrl.u32 %v954, 7
        %v956 = vsub.s32 1, %v955
        %v957 = vrot.slane %v893, %v956
        %975 = vset.pattern.permute.xlu0 2
        %976 = vperm.xlu0 %975, %v831
        %v977 = vpop.permute.xlu0 %976
        %980 = vset.pattern.permute.xlu0 2
        %981 = vperm.xlu0 %980, %v832
        %v982 = vpop.permute.xlu0 %981
        %v984 = vmul.f32 %v897, %v977
        %v985 = vmul.f32 %v901, %v977
        %v986 = vmul.f32 %v897, %v982
        %v987 = vmul.f32 %v901, %v982
        %v988 = vmul.f32 %v905, %v977
        %v989 = vmul.f32 %v909, %v977
        %v990 = vmul.f32 %v905, %v982
        %v991 = vmul.f32 %v909, %v982
        %v992 = vmul.f32 %v913, %v977
        %v993 = vmul.f32 %v917, %v977
        %v994 = vmul.f32 %v913, %v982
        %v995 = vmul.f32 %v917, %v982
        %v996 = vmul.f32 %v921, %v977
        %v997 = vmul.f32 %v925, %v977
        %v998 = vmul.f32 %v921, %v982
        %v999 = vmul.f32 %v925, %v982
        %v1000 = vmul.f32 %v929, %v977
        %v1001 = vmul.f32 %v933, %v977
        %v1002 = vmul.f32 %v929, %v982
        %v1003 = vmul.f32 %v933, %v982
        %v1004 = vmul.f32 %v937, %v977
        %v1005 = vmul.f32 %v941, %v977
        %v1006 = vmul.f32 %v937, %v982
        %v1007 = vmul.f32 %v941, %v982
        %v1008 = vmul.f32 %v945, %v977
        %v1009 = vmul.f32 %v949, %v977
        %v1010 = vmul.f32 %v945, %v982
        %v1011 = vmul.f32 %v949, %v982
        %v1012 = vmul.f32 %v953, %v977
        %v1013 = vmul.f32 %v957, %v977
        %v1014 = vmul.f32 %v953, %v982
        %v1015 = vmul.f32 %v957, %v982
        %v1016 = vadd.f32 %v796, %v984
        %v1017 = vadd.f32 %v797, %v985
        %v1018 = vadd.f32 %v798, %v986
        %v1019 = vadd.f32 %v799, %v987
        %v1020 = vadd.f32 %v800, %v988
        %v1021 = vadd.f32 %v801, %v989
        %v1022 = vadd.f32 %v802, %v990
        %v1023 = vadd.f32 %v803, %v991
        %v1024 = vadd.f32 %v804, %v992
        %v1025 = vadd.f32 %v805, %v993
        %v1026 = vadd.f32 %v806, %v994
        %v1027 = vadd.f32 %v807, %v995
        %v1028 = vadd.f32 %v808, %v996
        %v1029 = vadd.f32 %v809, %v997
        %v1030 = vadd.f32 %v810, %v998
        %v1031 = vadd.f32 %v811, %v999
        %v1032 = vadd.f32 %v812, %v1000
        %v1033 = vadd.f32 %v813, %v1001
        %v1034 = vadd.f32 %v814, %v1002
        %v1035 = vadd.f32 %v815, %v1003
        %v1036 = vadd.f32 %v816, %v1004
        %v1037 = vadd.f32 %v817, %v1005
        %v1038 = vadd.f32 %v818, %v1006
        %v1039 = vadd.f32 %v819, %v1007
        %v1040 = vadd.f32 %v820, %v1008
        %v1041 = vadd.f32 %v821, %v1009
        %v1042 = vadd.f32 %v822, %v1010
        %v1043 = vadd.f32 %v823, %v1011
        %v1044 = vadd.f32 %v824, %v1012
        %v1045 = vadd.f32 %v825, %v1013
        %v1046 = vadd.f32 %v826, %v1014
        %v1047 = vadd.f32 %v827, %v1015
        %v1048 = vxor.u32 %v840, 2147483648
        %v1049 = vxor.u32 %v841, 2147483648
        %v1050 = vmul.f32 %v1048, 1.442695
        %v1051 = vpow.pop %v1050
        %v1052 = vmul.f32 %v1049, 1.442695
        %v1053 = vpow.pop %v1052
        %v1054 = vadd.f32 %v1051, 1.0
        %v1055 = vadd.f32 %v1053, 1.0
        %v1056 = vrcp.pop %v1054
        %v1057 = vmul.f32 1.0, %v1056
        %v1058 = vrcp.pop %v1055
        %v1059 = vmul.f32 1.0, %v1058
        %1060 = vst [vmem:[%s351] sm:$0xff] %v1057
        %1061 = vst [vmem:[%s351 + $0x8] sm:$0xff] %v1059
        %p1062 = scmp.eq.s32.totalorder %s37, 0
        // Predicated region
        $region49: #{tpu_custom_call.1} parent=43 // pred_check
          %p1063 = pneg %p1062
        $region50: #{tpu_custom_call.1} parent=43 // pred_check_branch
          %1065 = sbr.rel (%p1063) target = $region52
        $region51: #{tpu_custom_call.1} parent=43 // pred_region
          %vm1066 = vcmask 130048
          %1067 = vst.msk [vmem:[#allocation2] sm:$0xff] %vm1066, -inf
          %vm1068 = vcmask 23552
          %1069 = vst.msk [vmem:[#allocation3] sm:$0xff] %vm1068, 0.0
          %1070 = vst.msk [vmem:[#allocation3 + $0x8] sm:$0xff] %vm1068, 0.0
          %1071 = vst.msk [vmem:[#allocation3 + $0x10] sm:$0xff] %vm1068, 0.0
          %1072 = vst.msk [vmem:[#allocation3 + $0x18] sm:$0xff] %vm1068, 0.0
          %1073 = vst.msk [vmem:[#allocation3 + $0x20] sm:$0xff] %vm1068, 0.0
          %1074 = vst.msk [vmem:[#allocation3 + $0x28] sm:$0xff] %vm1068, 0.0
          %1075 = vst.msk [vmem:[#allocation3 + $0x30] sm:$0xff] %vm1068, 0.0
          %1076 = vst.msk [vmem:[#allocation3 + $0x38] sm:$0xff] %vm1068, 0.0
          %1077 = vst.msk [vmem:[#allocation3 + $0x40] sm:$0xff] %vm1068, 0.0
          %1078 = vst.msk [vmem:[#allocation3 + $0x48] sm:$0xff] %vm1068, 0.0
          %1079 = vst.msk [vmem:[#allocation3 + $0x50] sm:$0xff] %vm1068, 0.0
          %1080 = vst.msk [vmem:[#allocation3 + $0x58] sm:$0xff] %vm1068, 0.0
          %1081 = vst.msk [vmem:[#allocation3 + $0x60] sm:$0xff] %vm1068, 0.0
          %1082 = vst.msk [vmem:[#allocation3 + $0x68] sm:$0xff] %vm1068, 0.0
          %1083 = vst.msk [vmem:[#allocation3 + $0x70] sm:$0xff] %vm1068, 0.0
          %1084 = vst.msk [vmem:[#allocation3 + $0x78] sm:$0xff] %vm1068, 0.0
        $region52: #{tpu_custom_call.1} parent=43 // pred_fallthru
          _
        %v1085 = vmax.f32 %v1016, %v1017
        %1086 = vmax.xlane.f32.xlu0 %v1085
        %v1087 = vpop.xlane.xlu0 %1086
        %v1088 = vmax.f32 %v1018, %v1019
        %1089 = vmax.xlane.f32.xlu0 %v1088
        %v1090 = vpop.xlane.xlu0 %1089
        %v1091 = vmax.f32 %v1020, %v1021
        %1092 = vmax.xlane.f32.xlu0 %v1091
        %v1093 = vpop.xlane.xlu0 %1092
        %v1094 = vmax.f32 %v1022, %v1023
        %1095 = vmax.xlane.f32.xlu0 %v1094
        %v1096 = vpop.xlane.xlu0 %1095
        %v1097 = vmax.f32 %v1024, %v1025
        %1098 = vmax.xlane.f32.xlu0 %v1097
        %v1099 = vpop.xlane.xlu0 %1098
        %v1100 = vmax.f32 %v1026, %v1027
        %1101 = vmax.xlane.f32.xlu0 %v1100
        %v1102 = vpop.xlane.xlu0 %1101
        %v1103 = vmax.f32 %v1028, %v1029
        %1104 = vmax.xlane.f32.xlu0 %v1103
        %v1105 = vpop.xlane.xlu0 %1104
        %v1106 = vmax.f32 %v1030, %v1031
        %1107 = vmax.xlane.f32.xlu0 %v1106
        %v1108 = vpop.xlane.xlu0 %1107
        %v1109 = vmax.f32 %v1032, %v1033
        %1110 = vmax.xlane.f32.xlu0 %v1109
        %v1111 = vpop.xlane.xlu0 %1110
        %v1112 = vmax.f32 %v1034, %v1035
        %1113 = vmax.xlane.f32.xlu0 %v1112
        %v1114 = vpop.xlane.xlu0 %1113
        %v1115 = vmax.f32 %v1036, %v1037
        %1116 = vmax.xlane.f32.xlu0 %v1115
        %v1117 = vpop.xlane.xlu0 %1116
        %v1118 = vmax.f32 %v1038, %v1039
        %1119 = vmax.xlane.f32.xlu0 %v1118
        %v1120 = vpop.xlane.xlu0 %1119
        %v1121 = vmax.f32 %v1040, %v1041
        %1122 = vmax.xlane.f32.xlu0 %v1121
        %v1123 = vpop.xlane.xlu0 %1122
        %v1124 = vmax.f32 %v1042, %v1043
        %1125 = vmax.xlane.f32.xlu0 %v1124
        %v1126 = vpop.xlane.xlu0 %1125
        %v1127 = vmax.f32 %v1044, %v1045
        %1128 = vmax.xlane.f32.xlu0 %v1127
        %v1129 = vpop.xlane.xlu0 %1128
        %v1130 = vmax.f32 %v1046, %v1047
        %1131 = vmax.xlane.f32.xlu0 %v1130
        %v1132 = vpop.xlane.xlu0 %1131
        %v1133 = vld [vmem:[#allocation2] sm:$0xff]
        %v1150 = vlaneseq
        %v1151 = vand.u32 %v1150, 127
        %v1152 = vlaneseq
        %v1153 = vshrl.u32 %v1152, 7
        %v1154 = vsub.s32 %v1151, %v1153
        %v1155 = vrot.slane %v1087, %v1154
        %v1156 = vadd.s32 %v1151, 4294967288
        %v1157 = vlaneseq
        %v1158 = vshrl.u32 %v1157, 7
        %v1159 = vsub.s32 %v1156, %v1158
        %v1160 = vrot.slane %v1090, %v1159
        %vm1161 = vcmask 130112
        %v1162 = vsel %vm1161, %v1160, %v1155
        %v1163 = vlaneseq
        %v1164 = vshrl.u32 %v1163, 7
        %v1165 = vsub.s32 %v1151, %v1164
        %v1166 = vrot.slane %v1093, %v1165
        %v1167 = vlaneseq
        %v1168 = vshrl.u32 %v1167, 7
        %v1169 = vsub.s32 %v1156, %v1168
        %v1170 = vrot.slane %v1096, %v1169
        %v1171 = vsel %vm1161, %v1170, %v1166
        %v1172 = vlaneseq
        %v1173 = vshrl.u32 %v1172, 7
        %v1174 = vsub.s32 %v1151, %v1173
        %v1175 = vrot.slane %v1099, %v1174
        %v1176 = vlaneseq
        %v1177 = vshrl.u32 %v1176, 7
        %v1178 = vsub.s32 %v1156, %v1177
        %v1179 = vrot.slane %v1102, %v1178
        %v1180 = vsel %vm1161, %v1179, %v1175
        %v1181 = vlaneseq
        %v1182 = vshrl.u32 %v1181, 7
        %v1183 = vsub.s32 %v1151, %v1182
        %v1184 = vrot.slane %v1105, %v1183
        %v1185 = vlaneseq
        %v1186 = vshrl.u32 %v1185, 7
        %v1187 = vsub.s32 %v1156, %v1186
        %v1188 = vrot.slane %v1108, %v1187
        %v1189 = vsel %vm1161, %v1188, %v1184
        %v1190 = vlaneseq
        %v1191 = vshrl.u32 %v1190, 7
        %v1192 = vsub.s32 %v1151, %v1191
        %v1193 = vrot.slane %v1111, %v1192
        %v1194 = vlaneseq
        %v1195 = vshrl.u32 %v1194, 7
        %v1196 = vsub.s32 %v1156, %v1195
        %v1197 = vrot.slane %v1114, %v1196
        %v1198 = vsel %vm1161, %v1197, %v1193
        %v1199 = vlaneseq
        %v1200 = vshrl.u32 %v1199, 7
        %v1201 = vsub.s32 %v1151, %v1200
        %v1202 = vrot.slane %v1117, %v1201
        %v1203 = vlaneseq
        %v1204 = vshrl.u32 %v1203, 7
        %v1205 = vsub.s32 %v1156, %v1204
        %v1206 = vrot.slane %v1120, %v1205
        %v1207 = vsel %vm1161, %v1206, %v1202
        %v1208 = vlaneseq
        %v1209 = vshrl.u32 %v1208, 7
        %v1210 = vsub.s32 %v1151, %v1209
        %v1211 = vrot.slane %v1123, %v1210
        %v1212 = vlaneseq
        %v1213 = vshrl.u32 %v1212, 7
        %v1214 = vsub.s32 %v1156, %v1213
        %v1215 = vrot.slane %v1126, %v1214
        %v1216 = vsel %vm1161, %v1215, %v1211
        %v1217 = vlaneseq
        %v1218 = vshrl.u32 %v1217, 7
        %v1219 = vsub.s32 %v1151, %v1218
        %v1220 = vrot.slane %v1129, %v1219
        %v1221 = vlaneseq
        %v1222 = vshrl.u32 %v1221, 7
        %v1223 = vsub.s32 %v1156, %v1222
        %v1224 = vrot.slane %v1132, %v1223
        %v1225 = vsel %vm1161, %v1224, %v1220
        %vm1226 = vcmask 1041409
        %v1227 = vsel %vm1226, %v1171, %v1162
        %vm1228 = vcmask 1042434
        %v1229 = vsel %vm1228, %v1180, %v1227
        %vm1230 = vcmask 1043459
        %v1231 = vsel %vm1230, %v1189, %v1229
        %vm1232 = vcmask 1044484
        %v1233 = vsel %vm1232, %v1198, %v1231
        %vm1234 = vcmask 1045509
        %v1235 = vsel %vm1234, %v1207, %v1233
        %vm1236 = vcmask 1046534
        %v1237 = vsel %vm1236, %v1216, %v1235
        %vm1238 = vcmask 1047559
        %v1239 = vsel %vm1238, %v1225, %v1237
        %v1241 = vmax.f32 %v1133, %v1239
        %v1242 = vsub.f32 %v1133, %v1241
        %v1243 = vmul.f32 %v1242, 1.442695
        %v1244 = vpow.pop %v1243
        %v1245 = vlaneseq
        %v1246 = vshrl.u32 %v1245, 7
        %v1247 = vsub.s32 0, %v1246
        %v1248 = vrot.slane %v1241, %v1247
        %1250 = vbcast.lane.b32.xlu0 %v1248, 256
        %v1251 = vpop.permute.xlu0 %1250
        %s1253 = sor.u32 256, 8
        %1254 = vbcast.lane.b32.xlu0 %v1248, %s1253
        %v1255 = vpop.permute.xlu0 %1254
        %v1256 = vlaneseq
        %v1257 = vshrl.u32 %v1256, 7
        %v1258 = vsub.s32 1, %v1257
        %v1259 = vrot.slane %v1241, %v1258
        %1261 = vbcast.lane.b32.xlu0 %v1259, 256
        %v1262 = vpop.permute.xlu0 %1261
        %s1264 = sor.u32 256, 8
        %1265 = vbcast.lane.b32.xlu0 %v1259, %s1264
        %v1266 = vpop.permute.xlu0 %1265
        %v1267 = vlaneseq
        %v1268 = vshrl.u32 %v1267, 7
        %v1269 = vsub.s32 2, %v1268
        %v1270 = vrot.slane %v1241, %v1269
        %1272 = vbcast.lane.b32.xlu0 %v1270, 256
        %v1273 = vpop.permute.xlu0 %1272
        %s1275 = sor.u32 256, 8
        %1276 = vbcast.lane.b32.xlu0 %v1270, %s1275
        %v1277 = vpop.permute.xlu0 %1276
        %v1278 = vlaneseq
        %v1279 = vshrl.u32 %v1278, 7
        %v1280 = vsub.s32 3, %v1279
        %v1281 = vrot.slane %v1241, %v1280
        %1283 = vbcast.lane.b32.xlu0 %v1281, 256
        %v1284 = vpop.permute.xlu0 %1283
        %s1286 = sor.u32 256, 8
        %1287 = vbcast.lane.b32.xlu0 %v1281, %s1286
        %v1288 = vpop.permute.xlu0 %1287
        %v1289 = vlaneseq
        %v1290 = vshrl.u32 %v1289, 7
        %v1291 = vsub.s32 4, %v1290
        %v1292 = vrot.slane %v1241, %v1291
        %1294 = vbcast.lane.b32.xlu0 %v1292, 256
        %v1295 = vpop.permute.xlu0 %1294
        %s1297 = sor.u32 256, 8
        %1298 = vbcast.lane.b32.xlu0 %v1292, %s1297
        %v1299 = vpop.permute.xlu0 %1298
        %v1300 = vlaneseq
        %v1301 = vshrl.u32 %v1300, 7
        %v1302 = vsub.s32 5, %v1301
        %v1303 = vrot.slane %v1241, %v1302
        %1305 = vbcast.lane.b32.xlu0 %v1303, 256
        %v1306 = vpop.permute.xlu0 %1305
        %s1308 = sor.u32 256, 8
        %1309 = vbcast.lane.b32.xlu0 %v1303, %s1308
        %v1310 = vpop.permute.xlu0 %1309
        %v1311 = vlaneseq
        %v1312 = vshrl.u32 %v1311, 7
        %v1313 = vsub.s32 6, %v1312
        %v1314 = vrot.slane %v1241, %v1313
        %1316 = vbcast.lane.b32.xlu0 %v1314, 256
        %v1317 = vpop.permute.xlu0 %1316
        %s1319 = sor.u32 256, 8
        %1320 = vbcast.lane.b32.xlu0 %v1314, %s1319
        %v1321 = vpop.permute.xlu0 %1320
        %v1322 = vlaneseq
        %v1323 = vshrl.u32 %v1322, 7
        %v1324 = vsub.s32 7, %v1323
        %v1325 = vrot.slane %v1241, %v1324
        %1327 = vbcast.lane.b32.xlu0 %v1325, 256
        %v1328 = vpop.permute.xlu0 %1327
        %s1330 = sor.u32 256, 8
        %1331 = vbcast.lane.b32.xlu0 %v1325, %s1330
        %v1332 = vpop.permute.xlu0 %1331
        %v1333 = vsub.f32 %v1016, %v1251
        %v1334 = vsub.f32 %v1017, %v1251
        %v1335 = vsub.f32 %v1018, %v1255
        %v1336 = vsub.f32 %v1019, %v1255
        %v1337 = vsub.f32 %v1020, %v1262
        %v1338 = vsub.f32 %v1021, %v1262
        %v1339 = vsub.f32 %v1022, %v1266
        %v1340 = vsub.f32 %v1023, %v1266
        %v1341 = vsub.f32 %v1024, %v1273
        %v1342 = vsub.f32 %v1025, %v1273
        %v1343 = vsub.f32 %v1026, %v1277
        %v1344 = vsub.f32 %v1027, %v1277
        %v1345 = vsub.f32 %v1028, %v1284
        %v1346 = vsub.f32 %v1029, %v1284
        %v1347 = vsub.f32 %v1030, %v1288
        %v1348 = vsub.f32 %v1031, %v1288
        %v1349 = vsub.f32 %v1032, %v1295
        %v1350 = vsub.f32 %v1033, %v1295
        %v1351 = vsub.f32 %v1034, %v1299
        %v1352 = vsub.f32 %v1035, %v1299
        %v1353 = vsub.f32 %v1036, %v1306
        %v1354 = vsub.f32 %v1037, %v1306
        %v1355 = vsub.f32 %v1038, %v1310
        %v1356 = vsub.f32 %v1039, %v1310
        %v1357 = vsub.f32 %v1040, %v1317
        %v1358 = vsub.f32 %v1041, %v1317
        %v1359 = vsub.f32 %v1042, %v1321
        %v1360 = vsub.f32 %v1043, %v1321
        %v1361 = vsub.f32 %v1044, %v1328
        %v1362 = vsub.f32 %v1045, %v1328
        %v1363 = vsub.f32 %v1046, %v1332
        %v1364 = vsub.f32 %v1047, %v1332
        %v1365 = vmul.f32 %v1333, 1.442695
        %v1366 = vpow.pop %v1365
        %v1367 = vmul.f32 %v1334, 1.442695
        %v1368 = vpow.pop %v1367
        %v1369 = vmul.f32 %v1335, 1.442695
        %v1370 = vpow.pop %v1369
        %v1371 = vmul.f32 %v1336, 1.442695
        %v1372 = vpow.pop %v1371
        %v1373 = vmul.f32 %v1337, 1.442695
        %v1374 = vpow.pop %v1373
        %v1375 = vmul.f32 %v1338, 1.442695
        %v1376 = vpow.pop %v1375
        %v1377 = vmul.f32 %v1339, 1.442695
        %v1378 = vpow.pop %v1377
        %v1379 = vmul.f32 %v1340, 1.442695
        %v1380 = vpow.pop %v1379
        %v1381 = vmul.f32 %v1341, 1.442695
        %v1382 = vpow.pop %v1381
        %v1383 = vmul.f32 %v1342, 1.442695
        %v1384 = vpow.pop %v1383
        %v1385 = vmul.f32 %v1343, 1.442695
        %v1386 = vpow.pop %v1385
        %v1387 = vmul.f32 %v1344, 1.442695
        %v1388 = vpow.pop %v1387
        %v1389 = vmul.f32 %v1345, 1.442695
        %v1390 = vpow.pop %v1389
        %v1391 = vmul.f32 %v1346, 1.442695
        %v1392 = vpow.pop %v1391
        %v1393 = vmul.f32 %v1347, 1.442695
        %v1394 = vpow.pop %v1393
        %v1395 = vmul.f32 %v1348, 1.442695
        %v1396 = vpow.pop %v1395
        %v1397 = vmul.f32 %v1349, 1.442695
        %v1398 = vpow.pop %v1397
        %v1399 = vmul.f32 %v1350, 1.442695
        %v1400 = vpow.pop %v1399
        %v1401 = vmul.f32 %v1351, 1.442695
        %v1402 = vpow.pop %v1401
        %v1403 = vmul.f32 %v1352, 1.442695
        %v1404 = vpow.pop %v1403
        %v1405 = vmul.f32 %v1353, 1.442695
        %v1406 = vpow.pop %v1405
        %v1407 = vmul.f32 %v1354, 1.442695
        %v1408 = vpow.pop %v1407
        %v1409 = vmul.f32 %v1355, 1.442695
        %v1410 = vpow.pop %v1409
        %v1411 = vmul.f32 %v1356, 1.442695
        %v1412 = vpow.pop %v1411
        %v1413 = vmul.f32 %v1357, 1.442695
        %v1414 = vpow.pop %v1413
        %v1415 = vmul.f32 %v1358, 1.442695
        %v1416 = vpow.pop %v1415
        %v1417 = vmul.f32 %v1359, 1.442695
        %v1418 = vpow.pop %v1417
        %v1419 = vmul.f32 %v1360, 1.442695
        %v1420 = vpow.pop %v1419
        %v1421 = vmul.f32 %v1361, 1.442695
        %v1422 = vpow.pop %v1421
        %v1423 = vmul.f32 %v1362, 1.442695
        %v1424 = vpow.pop %v1423
        %v1425 = vmul.f32 %v1363, 1.442695
        %v1426 = vpow.pop %v1425
        %v1427 = vmul.f32 %v1364, 1.442695
        %v1428 = vpow.pop %v1427
        %v1429 = vld [vmem:[%s364] sm:$0x77]
        %v1431 = vcombine.high %v1429, %v1429
        %1433 = vmatprep.subr.mxu0 %v1431
        %1434 = vmatpush1.xpose.msra.mxu0 %v1429
        %1435 = vmatprep.subr.mxu0 0.0
        %1436 = vmatpush1.xpose.msra.mxu0 0.0
        %1437 = vmatprep.subr.mxu0 0.0
        %1438 = vmatpush1.xpose.msra.mxu0 0.0
        %1439 = vmatprep.subr.mxu0 0.0
        %1440 = vmatpush1.xpose.msra.mxu0 0.0
        %1441 = vmatprep.subr.mxu0 0.0
        %1442 = vmatpush1.xpose.msra.mxu0 0.0
        %1443 = vmatprep.subr.mxu0 0.0
        %1444 = vmatpush1.xpose.msra.mxu0 0.0
        %1445 = vmatprep.subr.mxu0 0.0
        %1446 = vmatpush1.xpose.msra.mxu0 0.0
        %1447 = vmatprep.subr.mxu0 0.0
        %1448 = vmatpush1.xpose.msra.mxu0 0.0
        %1449 = vmatprep.subr.mxu0 0.0
        %1450 = vmatpush1.xpose.msra.mxu0 0.0
        %1451 = vmatprep.subr.mxu0 0.0
        %1452 = vmatpush1.xpose.msra.mxu0 0.0
        %1453 = vmatprep.subr.mxu0 0.0
        %1454 = vmatpush1.xpose.msra.mxu0 0.0
        %1455 = vmatprep.subr.mxu0 0.0
        %1456 = vmatpush1.xpose.msra.mxu0 0.0
        %1457 = vmatprep.subr.mxu0 0.0
        %1458 = vmatpush1.xpose.msra.mxu0 0.0
        %1459 = vmatprep.subr.mxu0 0.0
        %1460 = vmatpush1.xpose.msra.mxu0 0.0
        %1461 = vmatprep.subr.mxu0 0.0
        %1462 = vmatpush1.xpose.msra.mxu0 0.0
        %1463 = vmatprep.subr.mxu0 0.0
        %1464 = vmatpush1.xpose.msra.mxu0 0.0
        %1465 = vmatprep.subr.mxu0 0.0
        %1466 = vmatpush1.xpose.msra.mxu0 0.0
        %1467 = vmatprep.subr.mxu0 0.0
        %1468 = vmatpush1.xpose.msra.mxu0 0.0
        %1469 = vmatprep.subr.mxu0 0.0
        %1470 = vmatpush1.xpose.msra.mxu0 0.0
        %1471 = vmatprep.subr.mxu0 0.0
        %1472 = vmatpush1.xpose.msra.mxu0 0.0
        %1473 = vmatprep.subr.mxu0 0.0
        %1474 = vmatpush1.xpose.msra.mxu0 0.0
        %1475 = vmatprep.subr.mxu0 0.0
        %1476 = vmatpush1.xpose.msra.mxu0 0.0
        %1477 = vmatprep.subr.mxu0 0.0
        %1478 = vmatpush1.xpose.msra.mxu0 0.0
        %1479 = vmatprep.subr.mxu0 0.0
        %1480 = vmatpush1.xpose.msra.mxu0 0.0
        %1481 = vmatprep.subr.mxu0 0.0
        %1482 = vmatpush1.xpose.msra.mxu0 0.0
        %1483 = vmatprep.subr.mxu0 0.0
        %1484 = vmatpush1.xpose.msra.mxu0 0.0
        %1485 = vmatprep.subr.mxu0 0.0
        %1486 = vmatpush1.xpose.msra.mxu0 0.0
        %1487 = vmatprep.subr.mxu0 0.0
        %1488 = vmatpush1.xpose.msra.mxu0 0.0
        %1489 = vmatprep.subr.mxu0 0.0
        %1490 = vmatpush1.xpose.msra.mxu0 0.0
        %1491 = vmatprep.subr.mxu0 0.0
        %1492 = vmatpush1.xpose.msra.mxu0 0.0
        %1493 = vmatprep.subr.mxu0 0.0
        %1494 = vmatpush1.xpose.msra.mxu0 0.0
        %1495 = vmatprep.subr.mxu0 0.0
        %1496 = vmatpush1.xpose.msra.mxu0 0.0
        %1497 = vmatprep.mubr.f32.mxu0 %v1368
        %1498 = vmatmul.mubr.f32.gmra.mrb[0].mxu0 %v1366
        %v1499 = vpop.f32.mrb[0].mxu0
        %v1500 = vadd.f32 0.0, %v1499
        %v1501 = vpop.f32.mrb[0].mxu0
        %1502 = vmatprep.mubr.f32.mxu0 %v1372
        %1503 = vmatmul.mubr.f32.gmra.mrb[0].mxu0 %v1370
        %v1504 = vpop.f32.mrb[0].mxu0
        %v1505 = vadd.f32 0.0, %v1504
        %v1506 = vpop.f32.mrb[0].mxu0
        %1507 = vmatprep.mubr.f32.mxu0 %v1376
        %1508 = vmatmul.mubr.f32.gmra.mrb[0].mxu0 %v1374
        %v1509 = vpop.f32.mrb[0].mxu0
        %v1510 = vadd.f32 0.0, %v1509
        %v1511 = vpop.f32.mrb[0].mxu0
        %1512 = vmatprep.mubr.f32.mxu0 %v1380
        %1513 = vmatmul.mubr.f32.gmra.mrb[0].mxu0 %v1378
        %v1514 = vpop.f32.mrb[0].mxu0
        %v1515 = vadd.f32 0.0, %v1514
        %v1516 = vpop.f32.mrb[0].mxu0
        %1517 = vmatprep.mubr.f32.mxu0 %v1384
        %1518 = vmatmul.mubr.f32.gmra.mrb[0].mxu0 %v1382
        %v1519 = vpop.f32.mrb[0].mxu0
        %v1520 = vadd.f32 0.0, %v1519
        %v1521 = vpop.f32.mrb[0].mxu0
        %1522 = vmatprep.mubr.f32.mxu0 %v1388
        %1523 = vmatmul.mubr.f32.gmra.mrb[0].mxu0 %v1386
        %v1524 = vpop.f32.mrb[0].mxu0
        %v1525 = vadd.f32 0.0, %v1524
        %v1526 = vpop.f32.mrb[0].mxu0
        %1527 = vmatprep.mubr.f32.mxu0 %v1392
        %1528 = vmatmul.mubr.f32.gmra.mrb[0].mxu0 %v1390
        %v1529 = vpop.f32.mrb[0].mxu0
        %v1530 = vadd.f32 0.0, %v1529
        %v1531 = vpop.f32.mrb[0].mxu0
        %1532 = vmatprep.mubr.f32.mxu0 %v1396
        %1533 = vmatmul.mubr.f32.gmra.mrb[0].mxu0 %v1394
        %v1534 = vpop.f32.mrb[0].mxu0
        %v1535 = vadd.f32 0.0, %v1534
        %v1536 = vpop.f32.mrb[0].mxu0
        %1537 = vmatprep.mubr.f32.mxu0 %v1400
        %1538 = vmatmul.mubr.f32.gmra.mrb[0].mxu0 %v1398
        %v1539 = vpop.f32.mrb[0].mxu0
        %v1540 = vadd.f32 0.0, %v1539
        %v1541 = vpop.f32.mrb[0].mxu0
        %1542 = vmatprep.mubr.f32.mxu0 %v1404
        %1543 = vmatmul.mubr.f32.gmra.mrb[0].mxu0 %v1402
        %v1544 = vpop.f32.mrb[0].mxu0
        %v1545 = vadd.f32 0.0, %v1544
        %v1546 = vpop.f32.mrb[0].mxu0
        %1547 = vmatprep.mubr.f32.mxu0 %v1408
        %1548 = vmatmul.mubr.f32.gmra.mrb[0].mxu0 %v1406
        %v1549 = vpop.f32.mrb[0].mxu0
        %v1550 = vadd.f32 0.0, %v1549
        %v1551 = vpop.f32.mrb[0].mxu0
        %1552 = vmatprep.mubr.f32.mxu0 %v1412
        %1553 = vmatmul.mubr.f32.gmra.mrb[0].mxu0 %v1410
        %v1554 = vpop.f32.mrb[0].mxu0
        %v1555 = vadd.f32 0.0, %v1554
        %v1556 = vpop.f32.mrb[0].mxu0
        %1557 = vmatprep.mubr.f32.mxu0 %v1416
        %1558 = vmatmul.mubr.f32.gmra.mrb[0].mxu0 %v1414
        %v1559 = vpop.f32.mrb[0].mxu0
        %v1560 = vadd.f32 0.0, %v1559
        %v1561 = vpop.f32.mrb[0].mxu0
        %1562 = vmatprep.mubr.f32.mxu0 %v1420
        %1563 = vmatmul.mubr.f32.gmra.mrb[0].mxu0 %v1418
        %v1564 = vpop.f32.mrb[0].mxu0
        %v1565 = vadd.f32 0.0, %v1564
        %v1566 = vpop.f32.mrb[0].mxu0
        %1567 = vmatprep.mubr.f32.mxu0 %v1424
        %1568 = vmatmul.mubr.f32.gmra.mrb[0].mxu0 %v1422
        %v1569 = vpop.f32.mrb[0].mxu0
        %v1570 = vadd.f32 0.0, %v1569
        %v1571 = vpop.f32.mrb[0].mxu0
        %1572 = vmatprep.mubr.f32.mxu0 %v1428
        %1573 = vmatmul.mubr.f32.gmra.mrb[0].mxu0 %v1426
        %v1574 = vpop.f32.mrb[0].mxu0
        %v1575 = vadd.f32 0.0, %v1574
        %v1576 = vpop.f32.mrb[0].mxu0
        %1577 = vdwg.mxu0
        %v1578 = vld [vmem:[#allocation3] sm:$0xff]
        %v1579 = vld [vmem:[#allocation3 + $0x8] sm:$0xff]
        %v1580 = vld [vmem:[#allocation3 + $0x10] sm:$0xff]
        %v1581 = vld [vmem:[#allocation3 + $0x18] sm:$0xff]
        %v1582 = vld [vmem:[#allocation3 + $0x20] sm:$0xff]
        %v1583 = vld [vmem:[#allocation3 + $0x28] sm:$0xff]
        %v1584 = vld [vmem:[#allocation3 + $0x30] sm:$0xff]
        %v1585 = vld [vmem:[#allocation3 + $0x38] sm:$0xff]
        %v1586 = vld [vmem:[#allocation3 + $0x40] sm:$0xff]
        %v1587 = vld [vmem:[#allocation3 + $0x48] sm:$0xff]
        %v1588 = vld [vmem:[#allocation3 + $0x50] sm:$0xff]
        %v1589 = vld [vmem:[#allocation3 + $0x58] sm:$0xff]
        %v1590 = vld [vmem:[#allocation3 + $0x60] sm:$0xff]
        %v1591 = vld [vmem:[#allocation3 + $0x68] sm:$0xff]
        %v1592 = vld [vmem:[#allocation3 + $0x70] sm:$0xff]
        %v1593 = vld [vmem:[#allocation3 + $0x78] sm:$0xff]
        %v1594 = vlaneseq
        %v1595 = vshrl.u32 %v1594, 7
        %v1596 = vsub.s32 0, %v1595
        %v1597 = vrot.slane %v1244, %v1596
        %1599 = vbcast.lane.b32.xlu0 %v1597, 256
        %v1600 = vpop.permute.xlu0 %1599
        %s1602 = sor.u32 256, 8
        %1603 = vbcast.lane.b32.xlu0 %v1597, %s1602
        %v1604 = vpop.permute.xlu0 %1603
        %v1605 = vlaneseq
        %v1606 = vshrl.u32 %v1605, 7
        %v1607 = vsub.s32 1, %v1606
        %v1608 = vrot.slane %v1244, %v1607
        %1610 = vbcast.lane.b32.xlu0 %v1608, 256
        %v1611 = vpop.permute.xlu0 %1610
        %s1613 = sor.u32 256, 8
        %1614 = vbcast.lane.b32.xlu0 %v1608, %s1613
        %v1615 = vpop.permute.xlu0 %1614
        %v1616 = vlaneseq
        %v1617 = vshrl.u32 %v1616, 7
        %v1618 = vsub.s32 2, %v1617
        %v1619 = vrot.slane %v1244, %v1618
        %1621 = vbcast.lane.b32.xlu0 %v1619, 256
        %v1622 = vpop.permute.xlu0 %1621
        %s1624 = sor.u32 256, 8
        %1625 = vbcast.lane.b32.xlu0 %v1619, %s1624
        %v1626 = vpop.permute.xlu0 %1625
        %v1627 = vlaneseq
        %v1628 = vshrl.u32 %v1627, 7
        %v1629 = vsub.s32 3, %v1628
        %v1630 = vrot.slane %v1244, %v1629
        %1632 = vbcast.lane.b32.xlu0 %v1630, 256
        %v1633 = vpop.permute.xlu0 %1632
        %s1635 = sor.u32 256, 8
        %1636 = vbcast.lane.b32.xlu0 %v1630, %s1635
        %v1637 = vpop.permute.xlu0 %1636
        %v1638 = vlaneseq
        %v1639 = vshrl.u32 %v1638, 7
        %v1640 = vsub.s32 4, %v1639
        %v1641 = vrot.slane %v1244, %v1640
        %1643 = vbcast.lane.b32.xlu0 %v1641, 256
        %v1644 = vpop.permute.xlu0 %1643
        %s1646 = sor.u32 256, 8
        %1647 = vbcast.lane.b32.xlu0 %v1641, %s1646
        %v1648 = vpop.permute.xlu0 %1647
        %v1649 = vlaneseq
        %v1650 = vshrl.u32 %v1649, 7
        %v1651 = vsub.s32 5, %v1650
        %v1652 = vrot.slane %v1244, %v1651
        %1654 = vbcast.lane.b32.xlu0 %v1652, 256
        %v1655 = vpop.permute.xlu0 %1654
        %s1657 = sor.u32 256, 8
        %1658 = vbcast.lane.b32.xlu0 %v1652, %s1657
        %v1659 = vpop.permute.xlu0 %1658
        %v1660 = vlaneseq
        %v1661 = vshrl.u32 %v1660, 7
        %v1662 = vsub.s32 6, %v1661
        %v1663 = vrot.slane %v1244, %v1662
        %1665 = vbcast.lane.b32.xlu0 %v1663, 256
        %v1666 = vpop.permute.xlu0 %1665
        %s1668 = sor.u32 256, 8
        %1669 = vbcast.lane.b32.xlu0 %v1663, %s1668
        %v1670 = vpop.permute.xlu0 %1669
        %v1671 = vlaneseq
        %v1672 = vshrl.u32 %v1671, 7
        %v1673 = vsub.s32 7, %v1672
        %v1674 = vrot.slane %v1244, %v1673
        %1676 = vbcast.lane.b32.xlu0 %v1674, 256
        %v1677 = vpop.permute.xlu0 %1676
        %s1679 = sor.u32 256, 8
        %1680 = vbcast.lane.b32.xlu0 %v1674, %s1679
        %v1681 = vpop.permute.xlu0 %1680
        %v1682 = vmul.f32 %v1578, %v1600
        %v1683 = vmul.f32 %v1579, %v1604
        %v1684 = vmul.f32 %v1580, %v1611
        %v1685 = vmul.f32 %v1581, %v1615
        %v1686 = vmul.f32 %v1582, %v1622
        %v1687 = vmul.f32 %v1583, %v1626
        %v1688 = vmul.f32 %v1584, %v1633
        %v1689 = vmul.f32 %v1585, %v1637
        %v1690 = vmul.f32 %v1586, %v1644
        %v1691 = vmul.f32 %v1587, %v1648
        %v1692 = vmul.f32 %v1588, %v1655
        %v1693 = vmul.f32 %v1589, %v1659
        %v1694 = vmul.f32 %v1590, %v1666
        %v1695 = vmul.f32 %v1591, %v1670
        %v1696 = vmul.f32 %v1592, %v1677
        %v1697 = vmul.f32 %v1593, %v1681
        %v1698 = vadd.f32 %v1682, %v1500
        %v1699 = vadd.f32 %v1683, %v1505
        %v1700 = vadd.f32 %v1684, %v1510
        %v1701 = vadd.f32 %v1685, %v1515
        %v1702 = vadd.f32 %v1686, %v1520
        %v1703 = vadd.f32 %v1687, %v1525
        %v1704 = vadd.f32 %v1688, %v1530
        %v1705 = vadd.f32 %v1689, %v1535
        %v1706 = vadd.f32 %v1690, %v1540
        %v1707 = vadd.f32 %v1691, %v1545
        %v1708 = vadd.f32 %v1692, %v1550
        %v1709 = vadd.f32 %v1693, %v1555
        %v1710 = vadd.f32 %v1694, %v1560
        %v1711 = vadd.f32 %v1695, %v1565
        %v1712 = vadd.f32 %v1696, %v1570
        %v1713 = vadd.f32 %v1697, %v1575
        %vm1714 = vcmask 23552
        %1715 = vst.msk [vmem:[#allocation3] sm:$0xff] %vm1714, %v1698
        %1716 = vst.msk [vmem:[#allocation3 + $0x8] sm:$0xff] %vm1714, %v1699
        %1717 = vst.msk [vmem:[#allocation3 + $0x10] sm:$0xff] %vm1714, %v1700
        %1718 = vst.msk [vmem:[#allocation3 + $0x18] sm:$0xff] %vm1714, %v1701
        %1719 = vst.msk [vmem:[#allocation3 + $0x20] sm:$0xff] %vm1714, %v1702
        %1720 = vst.msk [vmem:[#allocation3 + $0x28] sm:$0xff] %vm1714, %v1703
        %1721 = vst.msk [vmem:[#allocation3 + $0x30] sm:$0xff] %vm1714, %v1704
        %1722 = vst.msk [vmem:[#allocation3 + $0x38] sm:$0xff] %vm1714, %v1705
        %1723 = vst.msk [vmem:[#allocation3 + $0x40] sm:$0xff] %vm1714, %v1706
        %1724 = vst.msk [vmem:[#allocation3 + $0x48] sm:$0xff] %vm1714, %v1707
        %1725 = vst.msk [vmem:[#allocation3 + $0x50] sm:$0xff] %vm1714, %v1708
        %1726 = vst.msk [vmem:[#allocation3 + $0x58] sm:$0xff] %vm1714, %v1709
        %1727 = vst.msk [vmem:[#allocation3 + $0x60] sm:$0xff] %vm1714, %v1710
        %1728 = vst.msk [vmem:[#allocation3 + $0x68] sm:$0xff] %vm1714, %v1711
        %1729 = vst.msk [vmem:[#allocation3 + $0x70] sm:$0xff] %vm1714, %v1712
        %1730 = vst.msk [vmem:[#allocation3 + $0x78] sm:$0xff] %vm1714, %v1713
        %vm1731 = vcmask 130048
        %1732 = vst.msk [vmem:[#allocation2] sm:$0xff] %vm1731, %v1241
        // Predicated region
        $region53: #{tpu_custom_call.1} parent=43 // pred_check
          %p1733 = pneg %p1062
        $region54: #{tpu_custom_call.1} parent=43 // pred_check_branch
          %1735 = sbr.rel (%p1733) target = $region56
        $region55: #{tpu_custom_call.1} parent=43 // pred_region
          %v1736 = vld [vmem:[#allocation3] sm:$0xff]
          %v1737 = vld [vmem:[#allocation3 + $0x8] sm:$0xff]
          %v1738 = vld [vmem:[#allocation3 + $0x10] sm:$0xff]
          %v1739 = vld [vmem:[#allocation3 + $0x18] sm:$0xff]
          %v1740 = vld [vmem:[#allocation3 + $0x20] sm:$0xff]
          %v1741 = vld [vmem:[#allocation3 + $0x28] sm:$0xff]
          %v1742 = vld [vmem:[#allocation3 + $0x30] sm:$0xff]
          %v1743 = vld [vmem:[#allocation3 + $0x38] sm:$0xff]
          %v1744 = vld [vmem:[#allocation3 + $0x40] sm:$0xff]
          %v1745 = vld [vmem:[#allocation3 + $0x48] sm:$0xff]
          %v1746 = vld [vmem:[#allocation3 + $0x50] sm:$0xff]
          %v1747 = vld [vmem:[#allocation3 + $0x58] sm:$0xff]
          %v1748 = vld [vmem:[#allocation3 + $0x60] sm:$0xff]
          %v1749 = vld [vmem:[#allocation3 + $0x68] sm:$0xff]
          %v1750 = vld [vmem:[#allocation3 + $0x70] sm:$0xff]
          %v1751 = vld [vmem:[#allocation3 + $0x78] sm:$0xff]
          %v1752 = vrcp.pop %v1736
          %v1753 = vrcp.pop %v1737
          %v1754 = vrcp.pop %v1738
          %v1755 = vrcp.pop %v1739
          %v1756 = vrcp.pop %v1740
          %v1757 = vrcp.pop %v1741
          %v1758 = vrcp.pop %v1742
          %v1759 = vrcp.pop %v1743
          %v1760 = vrcp.pop %v1744
          %v1761 = vrcp.pop %v1745
          %v1762 = vrcp.pop %v1746
          %v1763 = vrcp.pop %v1747
          %v1764 = vrcp.pop %v1748
          %v1765 = vrcp.pop %v1749
          %v1766 = vrcp.pop %v1750
          %v1767 = vrcp.pop %v1751
          %1784 = vrot.lane.b32.xlu0 %v1752, 1
          %v1785 = vpop.permute.xlu0 %1784
          %1786 = vrot.lane.b32.xlu0 %v1753, 1
          %v1787 = vpop.permute.xlu0 %1786
          %1788 = vrot.lane.b32.xlu0 %v1754, 1
          %v1789 = vpop.permute.xlu0 %1788
          %1790 = vrot.lane.b32.xlu0 %v1755, 1
          %v1791 = vpop.permute.xlu0 %1790
          %1792 = vrot.lane.b32.xlu0 %v1756, 1
          %v1793 = vpop.permute.xlu0 %1792
          %1794 = vrot.lane.b32.xlu0 %v1757, 1
          %v1795 = vpop.permute.xlu0 %1794
          %1796 = vrot.lane.b32.xlu0 %v1758, 1
          %v1797 = vpop.permute.xlu0 %1796
          %1798 = vrot.lane.b32.xlu0 %v1759, 1
          %v1799 = vpop.permute.xlu0 %1798
          %1800 = vrot.lane.b32.xlu0 %v1760, 1
          %v1801 = vpop.permute.xlu0 %1800
          %1802 = vrot.lane.b32.xlu0 %v1761, 1
          %v1803 = vpop.permute.xlu0 %1802
          %1804 = vrot.lane.b32.xlu0 %v1762, 1
          %v1805 = vpop.permute.xlu0 %1804
          %1806 = vrot.lane.b32.xlu0 %v1763, 1
          %v1807 = vpop.permute.xlu0 %1806
          %1808 = vrot.lane.b32.xlu0 %v1764, 1
          %v1809 = vpop.permute.xlu0 %1808
          %1810 = vrot.lane.b32.xlu0 %v1765, 1
          %v1811 = vpop.permute.xlu0 %1810
          %1812 = vrot.lane.b32.xlu0 %v1766, 1
          %v1813 = vpop.permute.xlu0 %1812
          %1814 = vrot.lane.b32.xlu0 %v1767, 1
          %v1815 = vpop.permute.xlu0 %1814
          %v1832 = vmul.f32 %v1736, %v1785
          %v1833 = vmul.f32 %v1737, %v1787
          %v1834 = vmul.f32 %v1738, %v1789
          %v1835 = vmul.f32 %v1739, %v1791
          %v1836 = vmul.f32 %v1740, %v1793
          %v1837 = vmul.f32 %v1741, %v1795
          %v1838 = vmul.f32 %v1742, %v1797
          %v1839 = vmul.f32 %v1743, %v1799
          %v1840 = vmul.f32 %v1744, %v1801
          %v1841 = vmul.f32 %v1745, %v1803
          %v1842 = vmul.f32 %v1746, %v1805
          %v1843 = vmul.f32 %v1747, %v1807
          %v1844 = vmul.f32 %v1748, %v1809
          %v1845 = vmul.f32 %v1749, %v1811
          %v1846 = vmul.f32 %v1750, %v1813
          %v1847 = vmul.f32 %v1751, %v1815
          %1848 = vrot.lane.b32.xlu0 %v1752, 2
          %v1849 = vpop.permute.xlu0 %1848
          %1850 = vrot.lane.b32.xlu0 %v1753, 2
          %v1851 = vpop.permute.xlu0 %1850
          %1852 = vrot.lane.b32.xlu0 %v1754, 2
          %v1853 = vpop.permute.xlu0 %1852
          %1854 = vrot.lane.b32.xlu0 %v1755, 2
          %v1855 = vpop.permute.xlu0 %1854
          %1856 = vrot.lane.b32.xlu0 %v1756, 2
          %v1857 = vpop.permute.xlu0 %1856
          %1858 = vrot.lane.b32.xlu0 %v1757, 2
          %v1859 = vpop.permute.xlu0 %1858
          %1860 = vrot.lane.b32.xlu0 %v1758, 2
          %v1861 = vpop.permute.xlu0 %1860
          %1862 = vrot.lane.b32.xlu0 %v1759, 2
          %v1863 = vpop.permute.xlu0 %1862
          %1864 = vrot.lane.b32.xlu0 %v1760, 2
          %v1865 = vpop.permute.xlu0 %1864
          %1866 = vrot.lane.b32.xlu0 %v1761, 2
          %v1867 = vpop.permute.xlu0 %1866
          %1868 = vrot.lane.b32.xlu0 %v1762, 2
          %v1869 = vpop.permute.xlu0 %1868
          %1870 = vrot.lane.b32.xlu0 %v1763, 2
          %v1871 = vpop.permute.xlu0 %1870
          %1872 = vrot.lane.b32.xlu0 %v1764, 2
          %v1873 = vpop.permute.xlu0 %1872
          %1874 = vrot.lane.b32.xlu0 %v1765, 2
          %v1875 = vpop.permute.xlu0 %1874
          %1876 = vrot.lane.b32.xlu0 %v1766, 2
          %v1877 = vpop.permute.xlu0 %1876
          %1878 = vrot.lane.b32.xlu0 %v1767, 2
          %v1879 = vpop.permute.xlu0 %1878
          %v1896 = vmul.f32 %v1736, %v1849
          %v1897 = vmul.f32 %v1737, %v1851
          %v1898 = vmul.f32 %v1738, %v1853
          %v1899 = vmul.f32 %v1739, %v1855
          %v1900 = vmul.f32 %v1740, %v1857
          %v1901 = vmul.f32 %v1741, %v1859
          %v1902 = vmul.f32 %v1742, %v1861
          %v1903 = vmul.f32 %v1743, %v1863
          %v1904 = vmul.f32 %v1744, %v1865
          %v1905 = vmul.f32 %v1745, %v1867
          %v1906 = vmul.f32 %v1746, %v1869
          %v1907 = vmul.f32 %v1747, %v1871
          %v1908 = vmul.f32 %v1748, %v1873
          %v1909 = vmul.f32 %v1749, %v1875
          %v1910 = vmul.f32 %v1750, %v1877
          %v1911 = vmul.f32 %v1751, %v1879
          %1928 = vset.pattern.permute.xlu0 1
          %1929 = vperm.xlu0 %1928, %v1832
          %v1930 = vpop.permute.xlu0 %1929
          %1931 = vset.pattern.permute.xlu0 1
          %1932 = vperm.xlu0 %1931, %v1833
          %v1933 = vpop.permute.xlu0 %1932
          %1934 = vset.pattern.permute.xlu0 1
          %1935 = vperm.xlu0 %1934, %v1834
          %v1936 = vpop.permute.xlu0 %1935
          %1937 = vset.pattern.permute.xlu0 1
          %1938 = vperm.xlu0 %1937, %v1835
          %v1939 = vpop.permute.xlu0 %1938
          %1940 = vset.pattern.permute.xlu0 1
          %1941 = vperm.xlu0 %1940, %v1836
          %v1942 = vpop.permute.xlu0 %1941
          %1943 = vset.pattern.permute.xlu0 1
          %1944 = vperm.xlu0 %1943, %v1837
          %v1945 = vpop.permute.xlu0 %1944
          %1946 = vset.pattern.permute.xlu0 1
          %1947 = vperm.xlu0 %1946, %v1838
          %v1948 = vpop.permute.xlu0 %1947
          %1949 = vset.pattern.permute.xlu0 1
          %1950 = vperm.xlu0 %1949, %v1839
          %v1951 = vpop.permute.xlu0 %1950
          %1952 = vset.pattern.permute.xlu0 1
          %1953 = vperm.xlu0 %1952, %v1840
          %v1954 = vpop.permute.xlu0 %1953
          %1955 = vset.pattern.permute.xlu0 1
          %1956 = vperm.xlu0 %1955, %v1841
          %v1957 = vpop.permute.xlu0 %1956
          %1958 = vset.pattern.permute.xlu0 1
          %1959 = vperm.xlu0 %1958, %v1842
          %v1960 = vpop.permute.xlu0 %1959
          %1961 = vset.pattern.permute.xlu0 1
          %1962 = vperm.xlu0 %1961, %v1843
          %v1963 = vpop.permute.xlu0 %1962
          %1964 = vset.pattern.permute.xlu0 1
          %1965 = vperm.xlu0 %1964, %v1844
          %v1966 = vpop.permute.xlu0 %1965
          %1967 = vset.pattern.permute.xlu0 1
          %1968 = vperm.xlu0 %1967, %v1845
          %v1969 = vpop.permute.xlu0 %1968
          %1970 = vset.pattern.permute.xlu0 1
          %1971 = vperm.xlu0 %1970, %v1846
          %v1972 = vpop.permute.xlu0 %1971
          %1973 = vset.pattern.permute.xlu0 1
          %1974 = vperm.xlu0 %1973, %v1847
          %v1975 = vpop.permute.xlu0 %1974
          %v1976 = vlaneseq
          %v1977 = vshrl.u32 %v1976, 7
          %v1978 = vsub.s32 %v1151, %v1977
          %v1979 = vrot.slane %v1930, %v1978
          %v1980 = vlaneseq
          %v1981 = vshrl.u32 %v1980, 7
          %v1982 = vsub.s32 %v1156, %v1981
          %v1983 = vrot.slane %v1933, %v1982
          %v1984 = vsel %vm1161, %v1983, %v1979
          %v1985 = vlaneseq
          %v1986 = vshrl.u32 %v1985, 7
          %v1987 = vsub.s32 %v1151, %v1986
          %v1988 = vrot.slane %v1936, %v1987
          %v1989 = vlaneseq
          %v1990 = vshrl.u32 %v1989, 7
          %v1991 = vsub.s32 %v1156, %v1990
          %v1992 = vrot.slane %v1939, %v1991
          %v1993 = vsel %vm1161, %v1992, %v1988
          %v1994 = vlaneseq
          %v1995 = vshrl.u32 %v1994, 7
          %v1996 = vsub.s32 %v1151, %v1995
          %v1997 = vrot.slane %v1942, %v1996
          %v1998 = vlaneseq
          %v1999 = vshrl.u32 %v1998, 7
          %v2000 = vsub.s32 %v1156, %v1999
          %v2001 = vrot.slane %v1945, %v2000
          %v2002 = vsel %vm1161, %v2001, %v1997
          %v2003 = vlaneseq
          %v2004 = vshrl.u32 %v2003, 7
          %v2005 = vsub.s32 %v1151, %v2004
          %v2006 = vrot.slane %v1948, %v2005
          %v2007 = vlaneseq
          %v2008 = vshrl.u32 %v2007, 7
          %v2009 = vsub.s32 %v1156, %v2008
          %v2010 = vrot.slane %v1951, %v2009
          %v2011 = vsel %vm1161, %v2010, %v2006
          %v2012 = vlaneseq
          %v2013 = vshrl.u32 %v2012, 7
          %v2014 = vsub.s32 %v1151, %v2013
          %v2015 = vrot.slane %v1954, %v2014
          %v2016 = vlaneseq
          %v2017 = vshrl.u32 %v2016, 7
          %v2018 = vsub.s32 %v1156, %v2017
          %v2019 = vrot.slane %v1957, %v2018
          %v2020 = vsel %vm1161, %v2019, %v2015
          %v2021 = vlaneseq
          %v2022 = vshrl.u32 %v2021, 7
          %v2023 = vsub.s32 %v1151, %v2022
          %v2024 = vrot.slane %v1960, %v2023
          %v2025 = vlaneseq
          %v2026 = vshrl.u32 %v2025, 7
          %v2027 = vsub.s32 %v1156, %v2026
          %v2028 = vrot.slane %v1963, %v2027
          %v2029 = vsel %vm1161, %v2028, %v2024
          %v2030 = vlaneseq
          %v2031 = vshrl.u32 %v2030, 7
          %v2032 = vsub.s32 %v1151, %v2031
          %v2033 = vrot.slane %v1966, %v2032
          %v2034 = vlaneseq
          %v2035 = vshrl.u32 %v2034, 7
          %v2036 = vsub.s32 %v1156, %v2035
          %v2037 = vrot.slane %v1969, %v2036
          %v2038 = vsel %vm1161, %v2037, %v2033
          %v2039 = vlaneseq
          %v2040 = vshrl.u32 %v2039, 7
          %v2041 = vsub.s32 %v1151, %v2040
          %v2042 = vrot.slane %v1972, %v2041
          %v2043 = vlaneseq
          %v2044 = vshrl.u32 %v2043, 7
          %v2045 = vsub.s32 %v1156, %v2044
          %v2046 = vrot.slane %v1975, %v2045
          %v2047 = vsel %vm1161, %v2046, %v2042
          %v2048 = vsel %vm1226, %v1993, %v1984
          %v2049 = vsel %vm1228, %v2002, %v2048
          %v2050 = vsel %vm1230, %v2011, %v2049
          %v2051 = vsel %vm1232, %v2020, %v2050
          %v2052 = vsel %vm1234, %v2029, %v2051
          %v2053 = vsel %vm1236, %v2038, %v2052
          %v2054 = vsel %vm1238, %v2047, %v2053
          %2072 = vset.pattern.permute.xlu0 2
          %2073 = vperm.xlu0 %2072, %v1896
          %v2074 = vpop.permute.xlu0 %2073
          %2075 = vset.pattern.permute.xlu0 2
          %2076 = vperm.xlu0 %2075, %v1897
          %v2077 = vpop.permute.xlu0 %2076
          %2078 = vset.pattern.permute.xlu0 2
          %2079 = vperm.xlu0 %2078, %v1898
          %v2080 = vpop.permute.xlu0 %2079
          %2081 = vset.pattern.permute.xlu0 2
          %2082 = vperm.xlu0 %2081, %v1899
          %v2083 = vpop.permute.xlu0 %2082
          %2084 = vset.pattern.permute.xlu0 2
          %2085 = vperm.xlu0 %2084, %v1900
          %v2086 = vpop.permute.xlu0 %2085
          %2087 = vset.pattern.permute.xlu0 2
          %2088 = vperm.xlu0 %2087, %v1901
          %v2089 = vpop.permute.xlu0 %2088
          %2090 = vset.pattern.permute.xlu0 2
          %2091 = vperm.xlu0 %2090, %v1902
          %v2092 = vpop.permute.xlu0 %2091
          %2093 = vset.pattern.permute.xlu0 2
          %2094 = vperm.xlu0 %2093, %v1903
          %v2095 = vpop.permute.xlu0 %2094
          %2096 = vset.pattern.permute.xlu0 2
          %2097 = vperm.xlu0 %2096, %v1904
          %v2098 = vpop.permute.xlu0 %2097
          %2099 = vset.pattern.permute.xlu0 2
          %2100 = vperm.xlu0 %2099, %v1905
          %v2101 = vpop.permute.xlu0 %2100
          %2102 = vset.pattern.permute.xlu0 2
          %2103 = vperm.xlu0 %2102, %v1906
          %v2104 = vpop.permute.xlu0 %2103
          %2105 = vset.pattern.permute.xlu0 2
          %2106 = vperm.xlu0 %2105, %v1907
          %v2107 = vpop.permute.xlu0 %2106
          %2108 = vset.pattern.permute.xlu0 2
          %2109 = vperm.xlu0 %2108, %v1908
          %v2110 = vpop.permute.xlu0 %2109
          %2111 = vset.pattern.permute.xlu0 2
          %2112 = vperm.xlu0 %2111, %v1909
          %v2113 = vpop.permute.xlu0 %2112
          %2114 = vset.pattern.permute.xlu0 2
          %2115 = vperm.xlu0 %2114, %v1910
          %v2116 = vpop.permute.xlu0 %2115
          %2117 = vset.pattern.permute.xlu0 2
          %2118 = vperm.xlu0 %2117, %v1911
          %v2119 = vpop.permute.xlu0 %2118
          %v2120 = vadd.s32 %v1151, 4294967280
          %v2121 = vlaneseq
          %v2122 = vshrl.u32 %v2121, 7
          %v2123 = vsub.s32 %v2120, %v2122
          %v2124 = vrot.slane %v2074, %v2123
          %v2125 = vadd.s32 %v1151, 4294967272
          %v2126 = vlaneseq
          %v2127 = vshrl.u32 %v2126, 7
          %v2128 = vsub.s32 %v2125, %v2127
          %v2129 = vrot.slane %v2077, %v2128
          %vm2130 = vcmask 261312
          %v2131 = vsel %vm2130, %v2129, %v2124
          %v2132 = vlaneseq
          %v2133 = vshrl.u32 %v2132, 7
          %v2134 = vsub.s32 %v2120, %v2133
          %v2135 = vrot.slane %v2080, %v2134
          %v2136 = vlaneseq
          %v2137 = vshrl.u32 %v2136, 7
          %v2138 = vsub.s32 %v2125, %v2137
          %v2139 = vrot.slane %v2083, %v2138
          %v2140 = vsel %vm2130, %v2139, %v2135
          %v2141 = vlaneseq
          %v2142 = vshrl.u32 %v2141, 7
          %v2143 = vsub.s32 %v2120, %v2142
          %v2144 = vrot.slane %v2086, %v2143
          %v2145 = vlaneseq
          %v2146 = vshrl.u32 %v2145, 7
          %v2147 = vsub.s32 %v2125, %v2146
          %v2148 = vrot.slane %v2089, %v2147
          %v2149 = vsel %vm2130, %v2148, %v2144
          %v2150 = vlaneseq
          %v2151 = vshrl.u32 %v2150, 7
          %v2152 = vsub.s32 %v2120, %v2151
          %v2153 = vrot.slane %v2092, %v2152
          %v2154 = vlaneseq
          %v2155 = vshrl.u32 %v2154, 7
          %v2156 = vsub.s32 %v2125, %v2155
          %v2157 = vrot.slane %v2095, %v2156
          %v2158 = vsel %vm2130, %v2157, %v2153
          %v2159 = vlaneseq
          %v2160 = vshrl.u32 %v2159, 7
          %v2161 = vsub.s32 %v2120, %v2160
          %v2162 = vrot.slane %v2098, %v2161
          %v2163 = vlaneseq
          %v2164 = vshrl.u32 %v2163, 7
          %v2165 = vsub.s32 %v2125, %v2164
          %v2166 = vrot.slane %v2101, %v2165
          %v2167 = vsel %vm2130, %v2166, %v2162
          %v2168 = vlaneseq
          %v2169 = vshrl.u32 %v2168, 7
          %v2170 = vsub.s32 %v2120, %v2169
          %v2171 = vrot.slane %v2104, %v2170
          %v2172 = vlaneseq
          %v2173 = vshrl.u32 %v2172, 7
          %v2174 = vsub.s32 %v2125, %v2173
          %v2175 = vrot.slane %v2107, %v2174
          %v2176 = vsel %vm2130, %v2175, %v2171
          %v2177 = vlaneseq
          %v2178 = vshrl.u32 %v2177, 7
          %v2179 = vsub.s32 %v2120, %v2178
          %v2180 = vrot.slane %v2110, %v2179
          %v2181 = vlaneseq
          %v2182 = vshrl.u32 %v2181, 7
          %v2183 = vsub.s32 %v2125, %v2182
          %v2184 = vrot.slane %v2113, %v2183
          %v2185 = vsel %vm2130, %v2184, %v2180
          %v2186 = vlaneseq
          %v2187 = vshrl.u32 %v2186, 7
          %v2188 = vsub.s32 %v2120, %v2187
          %v2189 = vrot.slane %v2116, %v2188
          %v2190 = vlaneseq
          %v2191 = vshrl.u32 %v2190, 7
          %v2192 = vsub.s32 %v2125, %v2191
          %v2193 = vrot.slane %v2119, %v2192
          %v2194 = vsel %vm2130, %v2193, %v2189
          %v2195 = vsel %vm1226, %v2140, %v2131
          %v2196 = vsel %vm1228, %v2149, %v2195
          %v2197 = vsel %vm1230, %v2158, %v2196
          %v2198 = vsel %vm1232, %v2167, %v2197
          %v2199 = vsel %vm1234, %v2176, %v2198
          %v2200 = vsel %vm1236, %v2185, %v2199
          %v2201 = vsel %vm1238, %v2194, %v2200
          %2203 = vset.pattern.permute.xlu0 0
          %2204 = vperm.xlu0 %2203, %v1752
          %v2205 = vpop.permute.xlu0 %2204
          %2206 = vset.pattern.permute.xlu0 0
          %2207 = vperm.xlu0 %2206, %v1753
          %v2208 = vpop.permute.xlu0 %2207
          %2209 = vset.pattern.permute.xlu0 0
          %2210 = vperm.xlu0 %2209, %v1754
          %v2211 = vpop.permute.xlu0 %2210
          %2212 = vset.pattern.permute.xlu0 0
          %2213 = vperm.xlu0 %2212, %v1755
          %v2214 = vpop.permute.xlu0 %2213
          %2215 = vset.pattern.permute.xlu0 0
          %2216 = vperm.xlu0 %2215, %v1756
          %v2217 = vpop.permute.xlu0 %2216
          %2218 = vset.pattern.permute.xlu0 0
          %2219 = vperm.xlu0 %2218, %v1757
          %v2220 = vpop.permute.xlu0 %2219
          %2221 = vset.pattern.permute.xlu0 0
          %2222 = vperm.xlu0 %2221, %v1758
          %v2223 = vpop.permute.xlu0 %2222
          %2224 = vset.pattern.permute.xlu0 0
          %2225 = vperm.xlu0 %2224, %v1759
          %v2226 = vpop.permute.xlu0 %2225
          %2227 = vset.pattern.permute.xlu0 0
          %2228 = vperm.xlu0 %2227, %v1760
          %v2229 = vpop.permute.xlu0 %2228
          %2230 = vset.pattern.permute.xlu0 0
          %2231 = vperm.xlu0 %2230, %v1761
          %v2232 = vpop.permute.xlu0 %2231
          %2233 = vset.pattern.permute.xlu0 0
          %2234 = vperm.xlu0 %2233, %v1762
          %v2235 = vpop.permute.xlu0 %2234
          %2236 = vset.pattern.permute.xlu0 0
          %2237 = vperm.xlu0 %2236, %v1763
          %v2238 = vpop.permute.xlu0 %2237
          %2239 = vset.pattern.permute.xlu0 0
          %2240 = vperm.xlu0 %2239, %v1764
          %v2241 = vpop.permute.xlu0 %2240
          %2242 = vset.pattern.permute.xlu0 0
          %2243 = vperm.xlu0 %2242, %v1765
          %v2244 = vpop.permute.xlu0 %2243
          %2245 = vset.pattern.permute.xlu0 0
          %2246 = vperm.xlu0 %2245, %v1766
          %v2247 = vpop.permute.xlu0 %2246
          %2248 = vset.pattern.permute.xlu0 0
          %2249 = vperm.xlu0 %2248, %v1767
          %v2250 = vpop.permute.xlu0 %2249
          %v2251 = vadd.s32 %v1151, 4294967264
          %v2252 = vlaneseq
          %v2253 = vshrl.u32 %v2252, 7
          %v2254 = vsub.s32 %v2251, %v2253
          %v2255 = vrot.slane %v2205, %v2254
          %v2256 = vadd.s32 %v1151, 4294967256
          %v2257 = vlaneseq
          %v2258 = vshrl.u32 %v2257, 7
          %v2259 = vsub.s32 %v2256, %v2258
          %v2260 = vrot.slane %v2208, %v2259
          %vm2261 = vcmask 392512
          %v2262 = vsel %vm2261, %v2260, %v2255
          %v2263 = vlaneseq
          %v2264 = vshrl.u32 %v2263, 7
          %v2265 = vsub.s32 %v2251, %v2264
          %v2266 = vrot.slane %v2211, %v2265
          %v2267 = vlaneseq
          %v2268 = vshrl.u32 %v2267, 7
          %v2269 = vsub.s32 %v2256, %v2268
          %v2270 = vrot.slane %v2214, %v2269
          %v2271 = vsel %vm2261, %v2270, %v2266
          %v2272 = vlaneseq
          %v2273 = vshrl.u32 %v2272, 7
          %v2274 = vsub.s32 %v2251, %v2273
          %v2275 = vrot.slane %v2217, %v2274
          %v2276 = vlaneseq
          %v2277 = vshrl.u32 %v2276, 7
          %v2278 = vsub.s32 %v2256, %v2277
          %v2279 = vrot.slane %v2220, %v2278
          %v2280 = vsel %vm2261, %v2279, %v2275
          %v2281 = vlaneseq
          %v2282 = vshrl.u32 %v2281, 7
          %v2283 = vsub.s32 %v2251, %v2282
          %v2284 = vrot.slane %v2223, %v2283
          %v2285 = vlaneseq
          %v2286 = vshrl.u32 %v2285, 7
          %v2287 = vsub.s32 %v2256, %v2286
          %v2288 = vrot.slane %v2226, %v2287
          %v2289 = vsel %vm2261, %v2288, %v2284
          %v2290 = vlaneseq
          %v2291 = vshrl.u32 %v2290, 7
          %v2292 = vsub.s32 %v2251, %v2291
          %v2293 = vrot.slane %v2229, %v2292
          %v2294 = vlaneseq
          %v2295 = vshrl.u32 %v2294, 7
          %v2296 = vsub.s32 %v2256, %v2295
          %v2297 = vrot.slane %v2232, %v2296
          %v2298 = vsel %vm2261, %v2297, %v2293
          %v2299 = vlaneseq
          %v2300 = vshrl.u32 %v2299, 7
          %v2301 = vsub.s32 %v2251, %v2300
          %v2302 = vrot.slane %v2235, %v2301
          %v2303 = vlaneseq
          %v2304 = vshrl.u32 %v2303, 7
          %v2305 = vsub.s32 %v2256, %v2304
          %v2306 = vrot.slane %v2238, %v2305
          %v2307 = vsel %vm2261, %v2306, %v2302
          %v2308 = vlaneseq
          %v2309 = vshrl.u32 %v2308, 7
          %v2310 = vsub.s32 %v2251, %v2309
          %v2311 = vrot.slane %v2241, %v2310
          %v2312 = vlaneseq
          %v2313 = vshrl.u32 %v2312, 7
          %v2314 = vsub.s32 %v2256, %v2313
          %v2315 = vrot.slane %v2244, %v2314
          %v2316 = vsel %vm2261, %v2315, %v2311
          %v2317 = vlaneseq
          %v2318 = vshrl.u32 %v2317, 7
          %v2319 = vsub.s32 %v2251, %v2318
          %v2320 = vrot.slane %v2247, %v2319
          %v2321 = vlaneseq
          %v2322 = vshrl.u32 %v2321, 7
          %v2323 = vsub.s32 %v2256, %v2322
          %v2324 = vrot.slane %v2250, %v2323
          %v2325 = vsel %vm2261, %v2324, %v2320
          %v2326 = vsel %vm1226, %v2271, %v2262
          %v2327 = vsel %vm1228, %v2280, %v2326
          %v2328 = vsel %vm1230, %v2289, %v2327
          %v2329 = vsel %vm1232, %v2298, %v2328
          %v2330 = vsel %vm1234, %v2307, %v2329
          %v2331 = vsel %vm1236, %v2316, %v2330
          %v2332 = vsel %vm1238, %v2325, %v2331
          %v2334 = vsel %vm1731, %v2054, %v2201
          %vm2335 = vcmask 261120
          %v2336 = vsel %vm2335, %v2334, %v2332
          %vm2337 = vcmask 392192
          %2338 = vst.msk [vmem:[%s358] sm:$0xff] %vm2337, %v2336
        $region56: #{tpu_custom_call.1} parent=43 // pred_fallthru
          _
        %s2339 = sand.u32 %s201, 1
        %s2340 = scalar_lea.sflag [#allocation7], %s2339
        %s2341 = sand.u32 %s201, 1
        %s2342 = smul.addr %s2341, 16
        %s2343 = scalar_lea.vmem [#allocation8], %s2342
        %s2344 = sand.u32 %s229, 1
        %s2345 = scalar_lea.sflag [#allocation10], %s2344
        %s2346 = sand.u32 %s229, 1
        %s2347 = smul.addr %s2346, 8
        %s2348 = scalar_lea.vmem [#allocation9], %s2347
        // Predicated region
        $region57: #{tpu_custom_call.1} parent=43 // pred_check
          %p2349 = pneg %p211
        $region58: #{tpu_custom_call.1} parent=43 // pred_check_branch
          %2351 = sbr.rel (%p2349) target = $region60
        $region59: #{tpu_custom_call.1} parent=43 // pred_region
          %s2352 = smul.u32 2, %s37
          %s2354 = ssub.s32 256, 256
          %2355 = vsyncadd %s2340, %s2354
          %s2356 = smul.addr %s36, 2
          %s2357 = sadd.s32 %s2352, %s2356
          %s2358 = smul.addr %s35, 2
          %s2359 = sadd.s32 %s2357, %s2358
          %s2360 = smul.addr %s2359, 128
          %s2361 = scalar_lea.hbm %s6, %s2360
          %s2363 = sshll.u32 %s2343, 4
          %s2364 = int_to_ptr.vmem [resolvable:$true] %s2363
          %2366 = dma.vmem_to_hbm [thread:$0]  %s2364, 256, %s2361, %s2340
        $region60: #{tpu_custom_call.1} parent=43 // pred_fallthru
          _
        // Predicated region
        $region61: #{tpu_custom_call.1} parent=43 // pred_check
          %p2367 = pneg %p239
        $region62: #{tpu_custom_call.1} parent=43 // pred_check_branch
          %2369 = sbr.rel (%p2367) target = $region64
        $region63: #{tpu_custom_call.1} parent=43 // pred_region
          %s2371 = ssub.s32 128, 128
          %2372 = vsyncadd %s2345, %s2371
          %s2373 = sadd.s32 %s36, %s35
          %s2374 = smul.addr %s2373, 128
          %s2375 = scalar_lea.hbm %s7, %s2374
          %s2377 = sshll.u32 %s2348, 4
          %s2378 = int_to_ptr.vmem [resolvable:$true] %s2377
          %2380 = dma.vmem_to_hbm [thread:$0]  %s2378, 128, %s2375, %s2345
        $region64: #{tpu_custom_call.1} parent=43 // pred_fallthru
          _
      $region44: #{tpu_custom_call.1} parent=5 // pred_fallthru
        _
      %p2381 = scmp.le.s32.totalorder 2, %s25
      // Predicated region
      $region65: #{tpu_custom_call.1} parent=5 // pred_check
        %p2382 = pneg %p2381
      $region66: #{tpu_custom_call.1} parent=5 // pred_check_branch
        %2384 = sbr.rel (%p2382) target = $region68
      $region67: #{tpu_custom_call.1} parent=5 // pred_region
        %s2385 = ssub.s32 %s25, 2
        // Predicated region
        $region69: #{tpu_custom_call.1} parent=67 // pred_check
          %p2386 = pneg %p217
        $region70: #{tpu_custom_call.1} parent=67 // pred_check_branch
          %2388 = sbr.rel (%p2386) target = $region72
        $region71: #{tpu_custom_call.1} parent=67 // pred_region
          %s2389 = sand.u32 %s202, 1
          %s2390 = scalar_lea.sflag [#allocation7], %s2389
          %s2391 = sand.u32 %s202, 1
          %s2392 = smul.addr %s2391, 16
          %s2393 = scalar_lea.vmem [#allocation8], %s2392
          %2394 = dma.done %s2390, 256
        $region72: #{tpu_custom_call.1} parent=67 // pred_fallthru
          _
        // Predicated region
        $region73: #{tpu_custom_call.1} parent=67 // pred_check
          %p2395 = pneg %p245
        $region74: #{tpu_custom_call.1} parent=67 // pred_check_branch
          %2397 = sbr.rel (%p2395) target = $region76
        $region75: #{tpu_custom_call.1} parent=67 // pred_region
          %s2398 = sand.u32 %s230, 1
          %s2399 = scalar_lea.sflag [#allocation10], %s2398
          %s2400 = sand.u32 %s230, 1
          %s2401 = smul.addr %s2400, 8
          %s2402 = scalar_lea.vmem [#allocation9], %s2401
          %2403 = dma.done %s2399, 128
        $region76: #{tpu_custom_call.1} parent=67 // pred_fallthru
          _
      $region68: #{tpu_custom_call.1} parent=5 // pred_fallthru
        _
    $region6: #{tpu_custom_call.1} parent=1 // loop_footer
      %s29 = sadd.s32 1, %s25
    $region7: #{tpu_custom_call.1} parent=1 // loop_footer_branch
      %24 = sbr.rel target = $region3
    $region8: #{tpu_custom_call.1} parent=1 // loop_exit
      _
    %2404 = vsyncpa [#allocation6], 1
    %s2405 = scalar_lea.sflag [#allocation6], 1
    %2406 = vsyncpa %s2405, 1
    %2407 = vsyncpa [#allocation7], 1
    %s2408 = scalar_lea.sflag [#allocation7], 1
    %2409 = vsyncpa %s2408, 1
    %2410 = vsyncpa [#allocation10], 1
    %s2411 = scalar_lea.sflag [#allocation10], 1
    %2412 = vsyncpa %s2411, 1

</llo_original>
